<compile_context>
chip_gen: v7x
topology: tpu7x:2x2x1
jax: 0.10.0
libtpu: 0.0.40
codegen_flags: <defaults>
</compile_context>

<pallas_src>
import jax
import jax.numpy as jnp
from jax import lax
from jax.experimental import pallas as pl
from jax.experimental.pallas import tpu as pltpu

EPS = 1e-5


def _bn_relu(h, gamma, beta, inv_n):
    """Train-mode BatchNorm1d + ReLU with fused one-pass statistics and the
    affine folded into a single per-feature scale/shift."""
    mean = jnp.sum(h, axis=0, keepdims=True) * inv_n                # (1, H)
    msq = jnp.sum(h * h, axis=0, keepdims=True) * inv_n             # (1, H)
    var = jnp.maximum(msq - mean * mean, 0.0)                       # (1, H)
    s = gamma * lax.rsqrt(var + EPS)                                # (1, H)
    t = beta - mean * s                                             # (1, H)
    return jnp.maximum(h * s + t, 0.0)


def linear_block(x, params, *, donate_x=False):
    """x: (N, H) float32.

    params: dict with
      w1, w2 : (H, H) in nn.Linear (out, in) layout.  Pre-cast these to
               bfloat16 ONCE at parameter setup to run the MXU in bf16 with
               f32 accumulation and halve the weight DMA traffic.
      b1, b2 : (H,)  -- accepted but unused: cancelled exactly by train-mode BN
      g1, be1, g2, be2 : (H,) BatchNorm gamma / beta

    donate_x: alias x's HBM buffer to the residual output (only if the caller
      does not need x after the call).
    """
    N, H = x.shape
    w1 = params["w1"]                       # (out, in) -- no wrapper transpose
    w2 = params["w2"]
    assert w1.shape == (H, H) and w2.shape == (H, H)
    assert w1.dtype == w2.dtype
    mm_dtype = w1.dtype                     # weight dtype drives MXU input dtype

    # Pack the four BN vectors into one (4, H) f32 array -> single DMA.
    bn = jnp.stack(
        [params["g1"], params["be1"], params["g2"], params["be2"]], axis=0
    ).astype(jnp.float32)

    dims = (((1,), (1,)), ((), ()))         # contract x's dim 1 with W's dim 1
    inv_n = 1.0 / float(N)

    def kernel(x_ref, w1_ref, w2_ref, bn_ref, out_ref, yx_ref, y_ref):
        x_mm = x_ref[...].astype(mm_dtype)

        # --- layer 1: matmul (bias dropped: cancelled by train-mode BN) ---
        h1 = lax.dot_general(x_mm, w1_ref[...], dims,
                             preferred_element_type=jnp.float32)
        yx = _bn_relu(h1, bn_ref[0:1, :], bn_ref[1:2, :], inv_n)  # dropout(p=0)
        yx_ref[...] = yx.astype(yx_ref.dtype)

        # --- layer 2 ---
        h2 = lax.dot_general(yx.astype(mm_dtype), w2_ref[...], dims,
                             preferred_element_type=jnp.float32)
        y = _bn_relu(h2, bn_ref[2:3, :], bn_ref[3:4, :], inv_n)   # dropout(p=0)
        y_ref[...] = y.astype(y_ref.dtype)

        # --- residual: re-read x from VMEM (keeps vreg live range short) ---
        out_ref[...] = (x_ref[...] + y).astype(out_ref.dtype)

    out_shape = (jax.ShapeDtypeStruct((N, H), x.dtype),
                 jax.ShapeDtypeStruct((N, H), x.dtype),
                 jax.ShapeDtypeStruct((N, H), x.dtype))

    w_itemsize = jnp.dtype(mm_dtype).itemsize
    x_itemsize = jnp.dtype(x.dtype).itemsize
    cost = pl.CostEstimate(
        flops=2 * 2 * N * H * H,                    # two (N,H)x(H,H) matmuls
        transcendentals=2 * H,                      # rsqrt per feature per BN
        bytes_accessed=(N * H * x_itemsize          # x in
                        + 2 * H * H * w_itemsize    # two weights (actual dtype)
                        + 4 * H * 4                 # packed BN params
                        + 3 * N * H * x_itemsize))  # three outputs

    # Explicit VMEM budget: single-buffered inputs + double-buffered outputs,
    # generous headroom, never below the 32 MiB v6e/v7x default.
    in_bytes = (N * H * x_itemsize + 2 * H * H * w_itemsize + 8 * H * 4)
    out_bytes = 3 * N * H * x_itemsize
    vmem_limit = int(min(100 * 1024 * 1024,
                         max(32 * 1024 * 1024,
                             2 * (in_bytes + 2 * out_bytes) + (4 << 20))))

    def build_and_call(single_buffer):
        spec_kw = dict(pipeline_mode=pl.Buffered(1)) if single_buffer else {}
        x_spec = pl.BlockSpec((N, H), lambda i: (0, 0), **spec_kw)
        w_spec = pl.BlockSpec((H, H), lambda i: (0, 0), **spec_kw)
        bn_spec = pl.BlockSpec((4, H), lambda i: (0, 0), **spec_kw)
        o_spec = pl.BlockSpec((N, H), lambda i: (0, 0))

        grid_spec = pltpu.PrefetchScalarGridSpec(
            num_scalar_prefetch=0,
            grid=(1,),
            in_specs=[x_spec, w_spec, w_spec, bn_spec],
            out_specs=[o_spec, o_spec, o_spec],
        )
        return pl.pallas_call(
            kernel,
            out_shape=out_shape,
            grid_spec=grid_spec,
            cost_estimate=cost,
            input_output_aliases=({0: 0} if donate_x else {}),
            compiler_params=pltpu.CompilerParams(
                dimension_semantics=("arbitrary",),
                vmem_limit_bytes=vmem_limit),
        )(x, w1, w2, bn)

    try:
        # grid=(1,) never re-fetches a block -> single-buffer the inputs so
        # only one copy of each weight lives in VMEM (v7x 64 MiB safety).
        return build_and_call(True)
    except Exception:
        # Fallback for jax builds that reject pipeline_mode=pl.Buffered(1):
        # identical results, just default double-buffering.
        return build_and_call(False)


def _reference(x, params):
    """Plain-JAX reference matching the PyTorch train-mode forward with p=0.
    Keeps the linear biases (the kernel drops them; train-mode BN cancels them)
    and uses the classic centered two-pass variance."""
    def bn(h, g, b):
        m = jnp.mean(h, axis=0, keepdims=True)
        v = jnp.mean((h - m) ** 2, axis=0, keepdims=True)
        return (h - m) / jnp.sqrt(v + EPS) * g + b

    h = x @ params["w1"].astype(jnp.float32).T + params["b1"]
    h = jnp.maximum(bn(h, params["g1"], params["be1"]), 0.0)
    yx = h
    h2 = yx @ params["w2"].astype(jnp.float32).T + params["b2"]
    h2 = jnp.maximum(bn(h2, params["g2"], params["be2"]), 0.0)
    return x + h2, yx, h2


if __name__ == "__main__":
    N = 128          # batch: fills the MXU rows on v5e, half of v6e/v7x
    H = 128          # linear_size

    key = jax.random.PRNGKey(0)
    ks = jax.random.split(key, 5)
    bound = 1.0 / (H ** 0.5)
    params = {
        "w1": jax.random.uniform(ks[0], (H, H), jnp.float32, -bound, bound),
        "b1": jax.random.uniform(ks[1], (H,), jnp.float32, -bound, bound),
        "g1": jnp.ones((H,), jnp.float32),
        "be1": jnp.zeros((H,), jnp.float32),
        "w2": jax.random.uniform(ks[2], (H, H), jnp.float32, -bound, bound),
        "b2": jax.random.uniform(ks[3], (H,), jnp.float32, -bound, bound),
        "g2": jnp.ones((H,), jnp.float32),
        "be2": jnp.zeros((H,), jnp.float32),
    }
    x = jax.random.normal(ks[4], (N, H), jnp.float32)

    # --- f32 path: tight check vs. the plain-JAX reference ------------------
    out, yx, y = linear_block(x, params)
    jax.block_until_ready((out, yx, y))

    ref_out, ref_yx, ref_y = _reference(x, params)
    assert jnp.allclose(out, ref_out, atol=2e-4, rtol=2e-4)
    assert jnp.allclose(yx, ref_yx, atol=2e-4, rtol=2e-4)
    assert jnp.allclose(y, ref_y, atol=2e-4, rtol=2e-4)

    # --- bf16-weight path: pre-cast ONCE at parameter setup -----------------
    # (halves weight DMA / VMEM; MXU runs bf16 inputs with f32 accumulation)
    params_bf16 = dict(params,
                       w1=params["w1"].astype(jnp.bfloat16),
                       w2=params["w2"].astype(jnp.bfloat16))
    out_b, yx_b, y_b = linear_block(x, params_bf16)
    jax.block_until_ready((out_b, yx_b, y_b))
    assert jnp.allclose(out_b, ref_out, atol=1.5e-1, rtol=5e-2)

    print("KERNEL_OK")
</pallas_src>

<mosaic_0001>
module attributes {stable_mosaic.version = 11 : i64} {
  func.func @kernel(%arg0: i32, %arg1: memref<128x128xf32, #tpu.memory_space<vmem>>, %arg2: memref<128x128xf32, #tpu.memory_space<vmem>>, %arg3: memref<128x128xf32, #tpu.memory_space<vmem>>, %arg4: memref<4x128xf32, #tpu.memory_space<vmem>>, %arg5: memref<128x128xf32, #tpu.memory_space<vmem>>, %arg6: memref<128x128xf32, #tpu.memory_space<vmem>>, %arg7: memref<128x128xf32, #tpu.memory_space<vmem>>) attributes {dimension_semantics = [#tpu.dimension_semantics<arbitrary>], iteration_bounds = array<i64: 1>, scalar_prefetch = 0 : i64, scratch_operands = 0 : i64, tpu.core_type = #tpu.core_type<tc>, window_params = [{pipeline_mode = #tpu.pipeline_mode<synchronous>, transform_indices = @transform_0, window_bounds = array<i64: 128, 128>}, {pipeline_mode = #tpu.pipeline_mode<synchronous>, transform_indices = @transform_1, window_bounds = array<i64: 128, 128>}, {pipeline_mode = #tpu.pipeline_mode<synchronous>, transform_indices = @transform_2, window_bounds = array<i64: 128, 128>}, {pipeline_mode = #tpu.pipeline_mode<synchronous>, transform_indices = @transform_3, window_bounds = array<i64: 4, 128>}, {pipeline_mode = #tpu.pipeline_mode<synchronous>, transform_indices = @transform_4, window_bounds = array<i64: 128, 128>}, {pipeline_mode = #tpu.pipeline_mode<synchronous>, transform_indices = @transform_5, window_bounds = array<i64: 128, 128>}, {pipeline_mode = #tpu.pipeline_mode<synchronous>, transform_indices = @transform_6, window_bounds = array<i64: 128, 128>}]} {
    %c0 = arith.constant 0 : index
    %c0_0 = arith.constant 0 : index
    %0 = vector.load %arg1[%c0, %c0_0] : memref<128x128xf32, #tpu.memory_space<vmem>>, vector<128x128xf32>
    %c0_1 = arith.constant 0 : index
    %c0_2 = arith.constant 0 : index
    %1 = vector.load %arg2[%c0_1, %c0_2] : memref<128x128xf32, #tpu.memory_space<vmem>>, vector<128x128xf32>
    %cst = arith.constant dense<0.000000e+00> : vector<128x128xf32>
    %2 = tpu.matmul %0, %1, %cst {dimension_numbers = #tpu.dot_dimension_numbers<[1], [1], [0], [0], [0, 0, 1, 0], [], []>} : vector<128x128xf32>, vector<128x128xf32>, vector<128x128xf32> -> vector<128x128xf32>
    %c0_3 = arith.constant 0 : index
    %c0_4 = arith.constant 0 : index
    %3 = vector.load %arg4[%c0_3, %c0_4] : memref<4x128xf32, #tpu.memory_space<vmem>>, vector<1x128xf32>
    %c1 = arith.constant 1 : index
    %c0_5 = arith.constant 0 : index
    %4 = vector.load %arg4[%c1, %c0_5] : memref<4x128xf32, #tpu.memory_space<vmem>>, vector<1x128xf32>
    %cst_6 = arith.constant dense<0.000000e+00> : vector<128xf32>
    %5 = vector.multi_reduction <add>, %2, %cst_6 [0] : vector<128x128xf32> to vector<128xf32>
    %6 = vector.shape_cast %5 : vector<128xf32> to vector<1x128xf32>
    %cst_7 = arith.constant 7.812500e-03 : f32
    %7 = vector.broadcast %cst_7 : f32 to vector<1x128xf32>
    %8 = arith.mulf %6, %7 : vector<1x128xf32>
    %9 = arith.mulf %2, %2 : vector<128x128xf32>
    %cst_8 = arith.constant dense<0.000000e+00> : vector<128xf32>
    %10 = vector.multi_reduction <add>, %9, %cst_8 [0] : vector<128x128xf32> to vector<128xf32>
    %11 = vector.shape_cast %10 : vector<128xf32> to vector<1x128xf32>
    %cst_9 = arith.constant 7.812500e-03 : f32
    %12 = vector.broadcast %cst_9 : f32 to vector<1x128xf32>
    %13 = arith.mulf %11, %12 : vector<1x128xf32>
    %14 = arith.mulf %8, %8 : vector<1x128xf32>
    %15 = arith.subf %13, %14 : vector<1x128xf32>
    %cst_10 = arith.constant 0.000000e+00 : f32
    %16 = vector.broadcast %cst_10 : f32 to vector<1x128xf32>
    %17 = arith.maximumf %15, %16 : vector<1x128xf32>
    %cst_11 = arith.constant 9.99999974E-6 : f32
    %18 = vector.broadcast %cst_11 : f32 to vector<1x128xf32>
    %19 = arith.addf %17, %18 : vector<1x128xf32>
    %20 = math.rsqrt %19 : vector<1x128xf32>
    %21 = arith.mulf %3, %20 : vector<1x128xf32>
    %22 = arith.mulf %8, %21 : vector<1x128xf32>
    %23 = arith.subf %4, %22 : vector<1x128xf32>
    %24 = vector.broadcast %21 : vector<1x128xf32> to vector<128x128xf32>
    %25 = arith.mulf %2, %24 : vector<128x128xf32>
    %26 = vector.broadcast %23 : vector<1x128xf32> to vector<128x128xf32>
    %27 = arith.addf %25, %26 : vector<128x128xf32>
    %cst_12 = arith.constant 0.000000e+00 : f32
    %28 = vector.broadcast %cst_12 : f32 to vector<128x128xf32>
    %29 = arith.maximumf %27, %28 : vector<128x128xf32>
    %c0_13 = arith.constant 0 : index
    %c0_14 = arith.constant 0 : index
    %30 = vector.load %arg6[%c0_13, %c0_14] : memref<128x128xf32, #tpu.memory_space<vmem>>, vector<128x128xf32>
    tpu.vector_store %arg6[%c0_13, %c0_14], %29 {strides = array<i32>} : memref<128x128xf32, #tpu.memory_space<vmem>>, vector<128x128xf32>,
    %c0_15 = arith.constant 0 : index
    %c0_16 = arith.constant 0 : index
    %31 = vector.load %arg3[%c0_15, %c0_16] : memref<128x128xf32, #tpu.memory_space<vmem>>, vector<128x128xf32>
    %cst_17 = arith.constant dense<0.000000e+00> : vector<128x128xf32>
    %32 = tpu.matmul %29, %31, %cst_17 {dimension_numbers = #tpu.dot_dimension_numbers<[1], [1], [0], [0], [0, 0, 1, 0], [], []>} : vector<128x128xf32>, vector<128x128xf32>, vector<128x128xf32> -> vector<128x128xf32>
    %c2 = arith.constant 2 : index
    %c0_18 = arith.constant 0 : index
    %33 = vector.load %arg4[%c2, %c0_18] : memref<4x128xf32, #tpu.memory_space<vmem>>, vector<1x128xf32>
    %c3 = arith.constant 3 : index
    %c0_19 = arith.constant 0 : index
    %34 = vector.load %arg4[%c3, %c0_19] : memref<4x128xf32, #tpu.memory_space<vmem>>, vector<1x128xf32>
    %cst_20 = arith.constant dense<0.000000e+00> : vector<128xf32>
    %35 = vector.multi_reduction <add>, %32, %cst_20 [0] : vector<128x128xf32> to vector<128xf32>
    %36 = vector.shape_cast %35 : vector<128xf32> to vector<1x128xf32>
    %cst_21 = arith.constant 7.812500e-03 : f32
    %37 = vector.broadcast %cst_21 : f32 to vector<1x128xf32>
    %38 = arith.mulf %36, %37 : vector<1x128xf32>
    %39 = arith.mulf %32, %32 : vector<128x128xf32>
    %cst_22 = arith.constant dense<0.000000e+00> : vector<128xf32>
    %40 = vector.multi_reduction <add>, %39, %cst_22 [0] : vector<128x128xf32> to vector<128xf32>
    %41 = vector.shape_cast %40 : vector<128xf32> to vector<1x128xf32>
    %cst_23 = arith.constant 7.812500e-03 : f32
    %42 = vector.broadcast %cst_23 : f32 to vector<1x128xf32>
    %43 = arith.mulf %41, %42 : vector<1x128xf32>
    %44 = arith.mulf %38, %38 : vector<1x128xf32>
    %45 = arith.subf %43, %44 : vector<1x128xf32>
    %cst_24 = arith.constant 0.000000e+00 : f32
    %46 = vector.broadcast %cst_24 : f32 to vector<1x128xf32>
    %47 = arith.maximumf %45, %46 : vector<1x128xf32>
    %cst_25 = arith.constant 9.99999974E-6 : f32
    %48 = vector.broadcast %cst_25 : f32 to vector<1x128xf32>
    %49 = arith.addf %47, %48 : vector<1x128xf32>
    %50 = math.rsqrt %49 : vector<1x128xf32>
    %51 = arith.mulf %33, %50 : vector<1x128xf32>
    %52 = arith.mulf %38, %51 : vector<1x128xf32>
    %53 = arith.subf %34, %52 : vector<1x128xf32>
    %54 = vector.broadcast %51 : vector<1x128xf32> to vector<128x128xf32>
    %55 = arith.mulf %32, %54 : vector<128x128xf32>
    %56 = vector.broadcast %53 : vector<1x128xf32> to vector<128x128xf32>
    %57 = arith.addf %55, %56 : vector<128x128xf32>
    %cst_26 = arith.constant 0.000000e+00 : f32
    %58 = vector.broadcast %cst_26 : f32 to vector<128x128xf32>
    %59 = arith.maximumf %57, %58 : vector<128x128xf32>
    %c0_27 = arith.constant 0 : index
    %c0_28 = arith.constant 0 : index
    %60 = vector.load %arg7[%c0_27, %c0_28] : memref<128x128xf32, #tpu.memory_space<vmem>>, vector<128x128xf32>
    tpu.vector_store %arg7[%c0_27, %c0_28], %59 {strides = array<i32>} : memref<128x128xf32, #tpu.memory_space<vmem>>, vector<128x128xf32>,
    %c0_29 = arith.constant 0 : index
    %c0_30 = arith.constant 0 : index
    %61 = vector.load %arg1[%c0_29, %c0_30] : memref<128x128xf32, #tpu.memory_space<vmem>>, vector<128x128xf32>
    %62 = arith.addf %61, %59 : vector<128x128xf32>
    %c0_31 = arith.constant 0 : index
    %c0_32 = arith.constant 0 : index
    %63 = vector.load %arg5[%c0_31, %c0_32] : memref<128x128xf32, #tpu.memory_space<vmem>>, vector<128x128xf32>
    tpu.vector_store %arg5[%c0_31, %c0_32], %62 {strides = array<i32>} : memref<128x128xf32, #tpu.memory_space<vmem>>, vector<128x128xf32>,
    return
  }
  func.func @transform_0(%arg0: i32) -> (i32, i32) {
    %c0_i32 = arith.constant 0 : i32
    %c0_i32_0 = arith.constant 0 : i32
    %c0_i32_1 = arith.constant 0 : i32
    return %c0_i32, %c0_i32_0 : i32, i32
  }
  func.func @transform_1(%arg0: i32) -> (i32, i32) {
    %c0_i32 = arith.constant 0 : i32
    %c0_i32_0 = arith.constant 0 : i32
    %c0_i32_1 = arith.constant 0 : i32
    return %c0_i32, %c0_i32_0 : i32, i32
  }
  func.func @transform_2(%arg0: i32) -> (i32, i32) {
    %c0_i32 = arith.constant 0 : i32
    %c0_i32_0 = arith.constant 0 : i32
    %c0_i32_1 = arith.constant 0 : i32
    return %c0_i32, %c0_i32_0 : i32, i32
  }
  func.func @transform_3(%arg0: i32) -> (i32, i32) {
    %c0_i32 = arith.constant 0 : i32
    %c0_i32_0 = arith.constant 0 : i32
    %c0_i32_1 = arith.constant 0 : i32
    return %c0_i32, %c0_i32_0 : i32, i32
  }
  func.func @transform_4(%arg0: i32) -> (i32, i32) {
    %c0_i32 = arith.constant 0 : i32
    %c0_i32_0 = arith.constant 0 : i32
    %c0_i32_1 = arith.constant 0 : i32
    return %c0_i32, %c0_i32_0 : i32, i32
  }
  func.func @transform_5(%arg0: i32) -> (i32, i32) {
    %c0_i32 = arith.constant 0 : i32
    %c0_i32_0 = arith.constant 0 : i32
    %c0_i32_1 = arith.constant 0 : i32
    return %c0_i32, %c0_i32_0 : i32, i32
  }
  func.func @transform_6(%arg0: i32) -> (i32, i32) {
    %c0_i32 = arith.constant 0 : i32
    %c0_i32_0 = arith.constant 0 : i32
    %c0_i32_1 = arith.constant 0 : i32
    return %c0_i32, %c0_i32_0 : i32, i32
  }
}

module attributes {stable_mosaic.version = 11 : i64} {
  func.func @kernel(%arg0: i32, %arg1: memref<128x128xf32, #tpu.memory_space<vmem>>, %arg2: memref<128x128xf32, #tpu.memory_space<vmem>>, %arg3: memref<128x128xf32, #tpu.memory_space<vmem>>, %arg4: memref<4x128xf32, #tpu.memory_space<vmem>>, %arg5: memref<128x128xf32, #tpu.memory_space<vmem>>, %arg6: memref<128x128xf32, #tpu.memory_space<vmem>>, %arg7: memref<128x128xf32, #tpu.memory_space<vmem>>) attributes {dimension_semantics = [#tpu.dimension_semantics<arbitrary>], iteration_bounds = array<i64: 1>, scalar_prefetch = 0 : i64, scratch_operands = 0 : i64, tpu.core_type = #tpu.core_type<tc>, window_params = [{pipeline_mode = #tpu.pipeline_mode<synchronous>, transform_indices = @transform_0, window_bounds = array<i64: 128, 128>}, {pipeline_mode = #tpu.pipeline_mode<synchronous>, transform_indices = @transform_1, window_bounds = array<i64: 128, 128>}, {pipeline_mode = #tpu.pipeline_mode<synchronous>, transform_indices = @transform_2, window_bounds = array<i64: 128, 128>}, {pipeline_mode = #tpu.pipeline_mode<synchronous>, transform_indices = @transform_3, window_bounds = array<i64: 4, 128>}, {pipeline_mode = #tpu.pipeline_mode<synchronous>, transform_indices = @transform_4, window_bounds = array<i64: 128, 128>}, {pipeline_mode = #tpu.pipeline_mode<synchronous>, transform_indices = @transform_5, window_bounds = array<i64: 128, 128>}, {pipeline_mode = #tpu.pipeline_mode<synchronous>, transform_indices = @transform_6, window_bounds = array<i64: 128, 128>}]} {
    %c0 = arith.constant 0 : index
    %c0_0 = arith.constant 0 : index
    %0 = vector.load %arg1[%c0, %c0_0] : memref<128x128xf32, #tpu.memory_space<vmem>>, vector<128x128xf32>
    %c0_1 = arith.constant 0 : index
    %c0_2 = arith.constant 0 : index
    %1 = vector.load %arg2[%c0_1, %c0_2] : memref<128x128xf32, #tpu.memory_space<vmem>>, vector<128x128xf32>
    %cst = arith.constant dense<0.000000e+00> : vector<128x128xf32>
    %2 = tpu.matmul %0, %1, %cst {dimension_numbers = #tpu.dot_dimension_numbers<[1], [1], [0], [0], [0, 0, 1, 0], [], []>} : vector<128x128xf32>, vector<128x128xf32>, vector<128x128xf32> -> vector<128x128xf32>
    %c0_3 = arith.constant 0 : index
    %c0_4 = arith.constant 0 : index
    %3 = vector.load %arg4[%c0_3, %c0_4] : memref<4x128xf32, #tpu.memory_space<vmem>>, vector<1x128xf32>
    %c1 = arith.constant 1 : index
    %c0_5 = arith.constant 0 : index
    %4 = vector.load %arg4[%c1, %c0_5] : memref<4x128xf32, #tpu.memory_space<vmem>>, vector<1x128xf32>
    %cst_6 = arith.constant dense<0.000000e+00> : vector<128xf32>
    %5 = vector.multi_reduction <add>, %2, %cst_6 [0] : vector<128x128xf32> to vector<128xf32>
    %6 = vector.shape_cast %5 : vector<128xf32> to vector<1x128xf32>
    %cst_7 = arith.constant 7.812500e-03 : f32
    %7 = vector.broadcast %cst_7 : f32 to vector<1x128xf32>
    %8 = arith.mulf %6, %7 : vector<1x128xf32>
    %9 = arith.mulf %2, %2 : vector<128x128xf32>
    %cst_8 = arith.constant dense<0.000000e+00> : vector<128xf32>
    %10 = vector.multi_reduction <add>, %9, %cst_8 [0] : vector<128x128xf32> to vector<128xf32>
    %11 = vector.shape_cast %10 : vector<128xf32> to vector<1x128xf32>
    %cst_9 = arith.constant 7.812500e-03 : f32
    %12 = vector.broadcast %cst_9 : f32 to vector<1x128xf32>
    %13 = arith.mulf %11, %12 : vector<1x128xf32>
    %14 = arith.mulf %8, %8 : vector<1x128xf32>
    %15 = arith.subf %13, %14 : vector<1x128xf32>
    %cst_10 = arith.constant 0.000000e+00 : f32
    %16 = vector.broadcast %cst_10 : f32 to vector<1x128xf32>
    %17 = arith.maximumf %15, %16 : vector<1x128xf32>
    %cst_11 = arith.constant 9.99999974E-6 : f32
    %18 = vector.broadcast %cst_11 : f32 to vector<1x128xf32>
    %19 = arith.addf %17, %18 : vector<1x128xf32>
    %20 = math.rsqrt %19 : vector<1x128xf32>
    %21 = arith.mulf %3, %20 : vector<1x128xf32>
    %22 = arith.mulf %8, %21 : vector<1x128xf32>
    %23 = arith.subf %4, %22 : vector<1x128xf32>
    %24 = vector.broadcast %21 : vector<1x128xf32> to vector<128x128xf32>
    %25 = arith.mulf %2, %24 : vector<128x128xf32>
    %26 = vector.broadcast %23 : vector<1x128xf32> to vector<128x128xf32>
    %27 = arith.addf %25, %26 : vector<128x128xf32>
    %cst_12 = arith.constant 0.000000e+00 : f32
    %28 = vector.broadcast %cst_12 : f32 to vector<128x128xf32>
    %29 = arith.maximumf %27, %28 : vector<128x128xf32>
    %c0_13 = arith.constant 0 : index
    %c0_14 = arith.constant 0 : index
    %30 = vector.load %arg6[%c0_13, %c0_14] : memref<128x128xf32, #tpu.memory_space<vmem>>, vector<128x128xf32>
    tpu.vector_store %arg6[%c0_13, %c0_14], %29 {strides = array<i32>} : memref<128x128xf32, #tpu.memory_space<vmem>>, vector<128x128xf32>,
    %c0_15 = arith.constant 0 : index
    %c0_16 = arith.constant 0 : index
    %31 = vector.load %arg3[%c0_15, %c0_16] : memref<128x128xf32, #tpu.memory_space<vmem>>, vector<128x128xf32>
    %cst_17 = arith.constant dense<0.000000e+00> : vector<128x128xf32>
    %32 = tpu.matmul %29, %31, %cst_17 {dimension_numbers = #tpu.dot_dimension_numbers<[1], [1], [0], [0], [0, 0, 1, 0], [], []>} : vector<128x128xf32>, vector<128x128xf32>, vector<128x128xf32> -> vector<128x128xf32>
    %c2 = arith.constant 2 : index
    %c0_18 = arith.constant 0 : index
    %33 = vector.load %arg4[%c2, %c0_18] : memref<4x128xf32, #tpu.memory_space<vmem>>, vector<1x128xf32>
    %c3 = arith.constant 3 : index
    %c0_19 = arith.constant 0 : index
    %34 = vector.load %arg4[%c3, %c0_19] : memref<4x128xf32, #tpu.memory_space<vmem>>, vector<1x128xf32>
    %cst_20 = arith.constant dense<0.000000e+00> : vector<128xf32>
    %35 = vector.multi_reduction <add>, %32, %cst_20 [0] : vector<128x128xf32> to vector<128xf32>
    %36 = vector.shape_cast %35 : vector<128xf32> to vector<1x128xf32>
    %cst_21 = arith.constant 7.812500e-03 : f32
    %37 = vector.broadcast %cst_21 : f32 to vector<1x128xf32>
    %38 = arith.mulf %36, %37 : vector<1x128xf32>
    %39 = arith.mulf %32, %32 : vector<128x128xf32>
    %cst_22 = arith.constant dense<0.000000e+00> : vector<128xf32>
    %40 = vector.multi_reduction <add>, %39, %cst_22 [0] : vector<128x128xf32> to vector<128xf32>
    %41 = vector.shape_cast %40 : vector<128xf32> to vector<1x128xf32>
    %cst_23 = arith.constant 7.812500e-03 : f32
    %42 = vector.broadcast %cst_23 : f32 to vector<1x128xf32>
    %43 = arith.mulf %41, %42 : vector<1x128xf32>
    %44 = arith.mulf %38, %38 : vector<1x128xf32>
    %45 = arith.subf %43, %44 : vector<1x128xf32>
    %cst_24 = arith.constant 0.000000e+00 : f32
    %46 = vector.broadcast %cst_24 : f32 to vector<1x128xf32>
    %47 = arith.maximumf %45, %46 : vector<1x128xf32>
    %cst_25 = arith.constant 9.99999974E-6 : f32
    %48 = vector.broadcast %cst_25 : f32 to vector<1x128xf32>
    %49 = arith.addf %47, %48 : vector<1x128xf32>
    %50 = math.rsqrt %49 : vector<1x128xf32>
    %51 = arith.mulf %33, %50 : vector<1x128xf32>
    %52 = arith.mulf %38, %51 : vector<1x128xf32>
    %53 = arith.subf %34, %52 : vector<1x128xf32>
    %54 = vector.broadcast %51 : vector<1x128xf32> to vector<128x128xf32>
    %55 = arith.mulf %32, %54 : vector<128x128xf32>
    %56 = vector.broadcast %53 : vector<1x128xf32> to vector<128x128xf32>
    %57 = arith.addf %55, %56 : vector<128x128xf32>
    %cst_26 = arith.constant 0.000000e+00 : f32
    %58 = vector.broadcast %cst_26 : f32 to vector<128x128xf32>
    %59 = arith.maximumf %57, %58 : vector<128x128xf32>
    %c0_27 = arith.constant 0 : index
    %c0_28 = arith.constant 0 : index
    %60 = vector.load %arg7[%c0_27, %c0_28] : memref<128x128xf32, #tpu.memory_space<vmem>>, vector<128x128xf32>
    tpu.vector_store %arg7[%c0_27, %c0_28], %59 {strides = array<i32>} : memref<128x128xf32, #tpu.memory_space<vmem>>, vector<128x128xf32>,
    %c0_29 = arith.constant 0 : index
    %c0_30 = arith.constant 0 : index
    %61 = vector.load %arg1[%c0_29, %c0_30] : memref<128x128xf32, #tpu.memory_space<vmem>>, vector<128x128xf32>
    %62 = arith.addf %61, %59 : vector<128x128xf32>
    %c0_31 = arith.constant 0 : index
    %c0_32 = arith.constant 0 : index
    %63 = vector.load %arg5[%c0_31, %c0_32] : memref<128x128xf32, #tpu.memory_space<vmem>>, vector<128x128xf32>
    tpu.vector_store %arg5[%c0_31, %c0_32], %62 {strides = array<i32>} : memref<128x128xf32, #tpu.memory_space<vmem>>, vector<128x128xf32>,
    return
  }
  func.func @transform_0(%arg0: i32) -> (i32, i32) {
    %c0_i32 = arith.constant 0 : i32
    %c0_i32_0 = arith.constant 0 : i32
    %c0_i32_1 = arith.constant 0 : i32
    return %c0_i32, %c0_i32_0 : i32, i32
  }
  func.func @transform_1(%arg0: i32) -> (i32, i32) {
    %c0_i32 = arith.constant 0 : i32
    %c0_i32_0 = arith.constant 0 : i32
    %c0_i32_1 = arith.constant 0 : i32
    return %c0_i32, %c0_i32_0 : i32, i32
  }
  func.func @transform_2(%arg0: i32) -> (i32, i32) {
    %c0_i32 = arith.constant 0 : i32
    %c0_i32_0 = arith.constant 0 : i32
    %c0_i32_1 = arith.constant 0 : i32
    return %c0_i32, %c0_i32_0 : i32, i32
  }
  func.func @transform_3(%arg0: i32) -> (i32, i32) {
    %c0_i32 = arith.constant 0 : i32
    %c0_i32_0 = arith.constant 0 : i32
    %c0_i32_1 = arith.constant 0 : i32
    return %c0_i32, %c0_i32_0 : i32, i32
  }
  func.func @transform_4(%arg0: i32) -> (i32, i32) {
    %c0_i32 = arith.constant 0 : i32
    %c0_i32_0 = arith.constant 0 : i32
    %c0_i32_1 = arith.constant 0 : i32
    return %c0_i32, %c0_i32_0 : i32, i32
  }
  func.func @transform_5(%arg0: i32) -> (i32, i32) {
    %c0_i32 = arith.constant 0 : i32
    %c0_i32_0 = arith.constant 0 : i32
    %c0_i32_1 = arith.constant 0 : i32
    return %c0_i32, %c0_i32_0 : i32, i32
  }
  func.func @transform_6(%arg0: i32) -> (i32, i32) {
    %c0_i32 = arith.constant 0 : i32
    %c0_i32_0 = arith.constant 0 : i32
    %c0_i32_1 = arith.constant 0 : i32
    return %c0_i32, %c0_i32_0 : i32, i32
  }
}

</mosaic_0001>

<llo_original>
// kernel: tpu_custom_call.1
$region0: #{tpu_custom_call.1}
  #allocation0 [shape = 'u32[]', space=smem, size = 0x4, offset = 0x4, fixed_abs, tag = 'smem constant byte address 0x4 - core index']
  #allocation1 [shape = 'u32[144,128]{1,0:T(1,128)}', space=vmem, size = 0x12000, scoped, tag = 'internal scratch']
  %s0 = inlined_call_operand.hbm [shape: f32[128,128], index: 0, kind: input, shape index: {}]
  %s1 = inlined_call_operand.hbm [shape: f32[128,128], index: 1, kind: input, shape index: {}]
  %s2 = inlined_call_operand.hbm [shape: f32[128,128], index: 2, kind: input, shape index: {}]
  %s3 = inlined_call_operand.vmem [shape: f32[4,128], index: 3, kind: input, shape index: {}]
  %s4 = inlined_call_operand.hbm [shape: f32[128,128], index: 4, kind: output, shape index: {0}]
  %s5 = inlined_call_operand.hbm [shape: f32[128,128], index: 5, kind: output, shape index: {1}]
  %s6 = inlined_call_operand.hbm [shape: f32[128,128], index: 6, kind: output, shape index: {2}]
  %7 = xla_tuple %s4, %s5, %s6
  %s8 = sld [smem:[#allocation0]]
  $region54: #{tpu_custom_call.1} parent=0
    _
  %s10 = ssub.s32 1, %s8
  %s11 = scalar_select 0, %s10, %s8
  $region1: #{tpu_custom_call.1} parent=0
    #allocation2 [shape = 'u8[65536]{0}', space=vmem, size = 0x10000, scoped, tag = 'input window, operand 0, single buffered']
    #allocation3 [shape = 's32[1]{0}', space=sflag, size = 0x4, scoped, tag = 'scoped memory for tpu_custom_call.1']
    #allocation4 [shape = 's32[1]{0}', space=sflag, size = 0x4, scoped, tag = 'scoped memory for tpu_custom_call.1']
    #allocation5 [shape = 'u8[65536]{0}', space=vmem, size = 0x10000, scoped, tag = 'input window, operand 1, single buffered']
    #allocation6 [shape = 's32[1]{0}', space=sflag, size = 0x4, scoped, tag = 'scoped memory for tpu_custom_call.1']
    #allocation7 [shape = 'u8[65536]{0}', space=vmem, size = 0x10000, scoped, tag = 'input window, operand 2, single buffered']
    #allocation8 [shape = 'u8[65536]{0}', space=vmem, size = 0x10000, scoped, tag = 'output window, operand 0, single buffered']
    #allocation9 [shape = 'u8[65536]{0}', space=vmem, size = 0x10000, scoped, tag = 'output window, operand 1, single buffered']
    #allocation10 [shape = 's32[1]{0}', space=sflag, size = 0x4, scoped, tag = 'scoped memory for tpu_custom_call.1']
    #allocation11 [shape = 'u8[65536]{0}', space=vmem, size = 0x10000, scoped, tag = 'output window, operand 2, single buffered']
    %12 = vsyncpa [#allocation3], 0
    %13 = vsyncpa [#allocation6], 0
    %14 = vsyncpa [#allocation4], 0
    %15 = vsyncpa [#allocation10], 0
    // Predicated region
    $region2: #{tpu_custom_call.1} parent=1 // pred_check
      _
    $region3: #{tpu_custom_call.1} parent=1 // pred_check_branch
      %17 = sbr.rel (0) target = $region5
    $region4: #{tpu_custom_call.1} parent=1 // pred_region
      %s19 = ssub.s32 2048, 2048
      %20 = vsyncadd [#allocation3], %s19
      %s21 = sshll.u32 [#allocation2], 4
      %s22 = int_to_ptr.vmem [resolvable:$true] %s21
      %27 = dma.hbm_to_vmem [thread:$0]  %s0, 2048, %s22, [#allocation3], 128, 128, 8
    $region5: #{tpu_custom_call.1} parent=1 // pred_fallthru
      _
    // Predicated region
    $region6: #{tpu_custom_call.1} parent=1 // pred_check
      _
    $region7: #{tpu_custom_call.1} parent=1 // pred_check_branch
      %29 = sbr.rel (0) target = $region9
    $region8: #{tpu_custom_call.1} parent=1 // pred_region
      %s31 = ssub.s32 2048, 2048
      %32 = vsyncadd [#allocation6], %s31
      %s33 = sshll.u32 [#allocation5], 4
      %s34 = int_to_ptr.vmem [resolvable:$true] %s33
      %39 = dma.hbm_to_vmem [thread:$0]  %s1, 2048, %s34, [#allocation6], 128, 128, 8
    $region9: #{tpu_custom_call.1} parent=1 // pred_fallthru
      _
    // Predicated region
    $region10: #{tpu_custom_call.1} parent=1 // pred_check
      _
    $region11: #{tpu_custom_call.1} parent=1 // pred_check_branch
      %41 = sbr.rel (0) target = $region13
    $region12: #{tpu_custom_call.1} parent=1 // pred_region
      %s43 = ssub.s32 2048, 2048
      %44 = vsyncadd [#allocation6], %s43
      %s45 = sshll.u32 [#allocation7], 4
      %s46 = int_to_ptr.vmem [resolvable:$true] %s45
      %51 = dma.hbm_to_vmem [thread:$0]  %s2, 2048, %s46, [#allocation6], 128, 128, 8
    $region13: #{tpu_custom_call.1} parent=1 // pred_fallthru
      _
    // Predicated region
    $region14: #{tpu_custom_call.1} parent=1 // pred_check
      _
    $region15: #{tpu_custom_call.1} parent=1 // pred_check_branch
      %53 = sbr.rel (0) target = $region17
    $region16: #{tpu_custom_call.1} parent=1 // pred_region
      _
    $region17: #{tpu_custom_call.1} parent=1 // pred_fallthru
      _
    // Predicated region
    $region18: #{tpu_custom_call.1} parent=1 // pred_check
      _
    $region19: #{tpu_custom_call.1} parent=1 // pred_check_branch
      %55 = sbr.rel (0) target = $region21
    $region20: #{tpu_custom_call.1} parent=1 // pred_region
      %56 = dma.done [#allocation3], 2048
    $region21: #{tpu_custom_call.1} parent=1 // pred_fallthru
      _
    // Predicated region
    $region22: #{tpu_custom_call.1} parent=1 // pred_check
      _
    $region23: #{tpu_custom_call.1} parent=1 // pred_check_branch
      %58 = sbr.rel (0) target = $region25
    $region24: #{tpu_custom_call.1} parent=1 // pred_region
      %59 = dma.done [#allocation6], 2048
    $region25: #{tpu_custom_call.1} parent=1 // pred_fallthru
      _
    // Predicated region
    $region26: #{tpu_custom_call.1} parent=1 // pred_check
      _
    $region27: #{tpu_custom_call.1} parent=1 // pred_check_branch
      %61 = sbr.rel (0) target = $region29
    $region28: #{tpu_custom_call.1} parent=1 // pred_region
      %62 = dma.done [#allocation6], 2048
    $region29: #{tpu_custom_call.1} parent=1 // pred_fallthru
      _
    %v63 = vld [vmem:[#allocation2] sm:$0xff]
    %v64 = vld [vmem:[#allocation2 + $0x8] sm:$0xff]
    %v65 = vld [vmem:[#allocation2 + $0x10] sm:$0xff]
    %v66 = vld [vmem:[#allocation2 + $0x18] sm:$0xff]
    %v67 = vld [vmem:[#allocation2 + $0x20] sm:$0xff]
    %v68 = vld [vmem:[#allocation2 + $0x28] sm:$0xff]
    %v69 = vld [vmem:[#allocation2 + $0x30] sm:$0xff]
    %v70 = vld [vmem:[#allocation2 + $0x38] sm:$0xff]
    %v71 = vld [vmem:[#allocation2 + $0x40] sm:$0xff]
    %v72 = vld [vmem:[#allocation2 + $0x48] sm:$0xff]
    %v73 = vld [vmem:[#allocation2 + $0x50] sm:$0xff]
    %v74 = vld [vmem:[#allocation2 + $0x58] sm:$0xff]
    %v75 = vld [vmem:[#allocation2 + $0x60] sm:$0xff]
    %v76 = vld [vmem:[#allocation2 + $0x68] sm:$0xff]
    %v77 = vld [vmem:[#allocation2 + $0x70] sm:$0xff]
    %v78 = vld [vmem:[#allocation2 + $0x78] sm:$0xff]
    %v79 = vld [vmem:[#allocation5] sm:$0xff]
    %v80 = vld [vmem:[#allocation5 + $0x8] sm:$0xff]
    %v81 = vld [vmem:[#allocation5 + $0x10] sm:$0xff]
    %v82 = vld [vmem:[#allocation5 + $0x18] sm:$0xff]
    %v83 = vld [vmem:[#allocation5 + $0x20] sm:$0xff]
    %v84 = vld [vmem:[#allocation5 + $0x28] sm:$0xff]
    %v85 = vld [vmem:[#allocation5 + $0x30] sm:$0xff]
    %v86 = vld [vmem:[#allocation5 + $0x38] sm:$0xff]
    %v87 = vld [vmem:[#allocation5 + $0x40] sm:$0xff]
    %v88 = vld [vmem:[#allocation5 + $0x48] sm:$0xff]
    %v89 = vld [vmem:[#allocation5 + $0x50] sm:$0xff]
    %v90 = vld [vmem:[#allocation5 + $0x58] sm:$0xff]
    %v91 = vld [vmem:[#allocation5 + $0x60] sm:$0xff]
    %v92 = vld [vmem:[#allocation5 + $0x68] sm:$0xff]
    %v93 = vld [vmem:[#allocation5 + $0x70] sm:$0xff]
    %v94 = vld [vmem:[#allocation5 + $0x78] sm:$0xff]
    %95 = vmatprep.subr.mxu0 0.0
    %96 = vmatpush1.xpose.msra.mxu0 %v79
    %97 = vmatprep.subr.mxu0 0.0
    %98 = vmatpush1.xpose.msra.mxu0 %v80
    %99 = vmatprep.subr.mxu0 0.0
    %100 = vmatpush1.xpose.msra.mxu0 %v81
    %101 = vmatprep.subr.mxu0 0.0
    %102 = vmatpush1.xpose.msra.mxu0 %v82
    %103 = vmatprep.subr.mxu0 0.0
    %104 = vmatpush1.xpose.msra.mxu0 %v83
    %105 = vmatprep.subr.mxu0 0.0
    %106 = vmatpush1.xpose.msra.mxu0 %v84
    %107 = vmatprep.subr.mxu0 0.0
    %108 = vmatpush1.xpose.msra.mxu0 %v85
    %109 = vmatprep.subr.mxu0 0.0
    %110 = vmatpush1.xpose.msra.mxu0 %v86
    %111 = vmatprep.subr.mxu0 0.0
    %112 = vmatpush1.xpose.msra.mxu0 %v87
    %113 = vmatprep.subr.mxu0 0.0
    %114 = vmatpush1.xpose.msra.mxu0 %v88
    %115 = vmatprep.subr.mxu0 0.0
    %116 = vmatpush1.xpose.msra.mxu0 %v89
    %117 = vmatprep.subr.mxu0 0.0
    %118 = vmatpush1.xpose.msra.mxu0 %v90
    %119 = vmatprep.subr.mxu0 0.0
    %120 = vmatpush1.xpose.msra.mxu0 %v91
    %121 = vmatprep.subr.mxu0 0.0
    %122 = vmatpush1.xpose.msra.mxu0 %v92
    %123 = vmatprep.subr.mxu0 0.0
    %124 = vmatpush1.xpose.msra.mxu0 %v93
    %125 = vmatprep.subr.mxu0 0.0
    %126 = vmatpush1.xpose.msra.mxu0 %v94
    %127 = vmatprep.subr.mxu0 0.0
    %128 = vmatpush1.xpose.msra.mxu0 0.0
    %129 = vmatprep.subr.mxu0 0.0
    %130 = vmatpush1.xpose.msra.mxu0 0.0
    %131 = vmatprep.subr.mxu0 0.0
    %132 = vmatpush1.xpose.msra.mxu0 0.0
    %133 = vmatprep.subr.mxu0 0.0
    %134 = vmatpush1.xpose.msra.mxu0 0.0
    %135 = vmatprep.subr.mxu0 0.0
    %136 = vmatpush1.xpose.msra.mxu0 0.0
    %137 = vmatprep.subr.mxu0 0.0
    %138 = vmatpush1.xpose.msra.mxu0 0.0
    %139 = vmatprep.subr.mxu0 0.0
    %140 = vmatpush1.xpose.msra.mxu0 0.0
    %141 = vmatprep.subr.mxu0 0.0
    %142 = vmatpush1.xpose.msra.mxu0 0.0
    %143 = vmatprep.subr.mxu0 0.0
    %144 = vmatpush1.xpose.msra.mxu0 0.0
    %145 = vmatprep.subr.mxu0 0.0
    %146 = vmatpush1.xpose.msra.mxu0 0.0
    %147 = vmatprep.subr.mxu0 0.0
    %148 = vmatpush1.xpose.msra.mxu0 0.0
    %149 = vmatprep.subr.mxu0 0.0
    %150 = vmatpush1.xpose.msra.mxu0 0.0
    %151 = vmatprep.subr.mxu0 0.0
    %152 = vmatpush1.xpose.msra.mxu0 0.0
    %153 = vmatprep.subr.mxu0 0.0
    %154 = vmatpush1.xpose.msra.mxu0 0.0
    %155 = vmatprep.subr.mxu0 0.0
    %156 = vmatpush1.xpose.msra.mxu0 0.0
    %157 = vmatprep.subr.mxu0 0.0
    %158 = vmatpush1.xpose.msra.mxu0 0.0
    %159 = vmatprep.mubr.f32.mxu0 0.0
    %160 = vmatmul.mubr.f32.gmra.mrb[0].mxu0 %v63
    %v161 = vpop.f32.mrb[0].mxu0
    %v162 = vadd.f32 0.0, %v161
    %v163 = vpop.f32.mrb[0].mxu0
    %164 = vmatprep.mubr.f32.mxu0 0.0
    %165 = vmatmul.mubr.f32.gmra.mrb[0].mxu0 %v64
    %v166 = vpop.f32.mrb[0].mxu0
    %v167 = vadd.f32 0.0, %v166
    %v168 = vpop.f32.mrb[0].mxu0
    %169 = vmatprep.mubr.f32.mxu0 0.0
    %170 = vmatmul.mubr.f32.gmra.mrb[0].mxu0 %v65
    %v171 = vpop.f32.mrb[0].mxu0
    %v172 = vadd.f32 0.0, %v171
    %v173 = vpop.f32.mrb[0].mxu0
    %174 = vmatprep.mubr.f32.mxu0 0.0
    %175 = vmatmul.mubr.f32.gmra.mrb[0].mxu0 %v66
    %v176 = vpop.f32.mrb[0].mxu0
    %v177 = vadd.f32 0.0, %v176
    %v178 = vpop.f32.mrb[0].mxu0
    %179 = vmatprep.mubr.f32.mxu0 0.0
    %180 = vmatmul.mubr.f32.gmra.mrb[0].mxu0 %v67
    %v181 = vpop.f32.mrb[0].mxu0
    %v182 = vadd.f32 0.0, %v181
    %v183 = vpop.f32.mrb[0].mxu0
    %184 = vmatprep.mubr.f32.mxu0 0.0
    %185 = vmatmul.mubr.f32.gmra.mrb[0].mxu0 %v68
    %v186 = vpop.f32.mrb[0].mxu0
    %v187 = vadd.f32 0.0, %v186
    %v188 = vpop.f32.mrb[0].mxu0
    %189 = vmatprep.mubr.f32.mxu0 0.0
    %190 = vmatmul.mubr.f32.gmra.mrb[0].mxu0 %v69
    %v191 = vpop.f32.mrb[0].mxu0
    %v192 = vadd.f32 0.0, %v191
    %v193 = vpop.f32.mrb[0].mxu0
    %194 = vmatprep.mubr.f32.mxu0 0.0
    %195 = vmatmul.mubr.f32.gmra.mrb[0].mxu0 %v70
    %v196 = vpop.f32.mrb[0].mxu0
    %v197 = vadd.f32 0.0, %v196
    %v198 = vpop.f32.mrb[0].mxu0
    %199 = vmatprep.mubr.f32.mxu0 0.0
    %200 = vmatmul.mubr.f32.gmra.mrb[0].mxu0 %v71
    %v201 = vpop.f32.mrb[0].mxu0
    %v202 = vadd.f32 0.0, %v201
    %v203 = vpop.f32.mrb[0].mxu0
    %204 = vmatprep.mubr.f32.mxu0 0.0
    %205 = vmatmul.mubr.f32.gmra.mrb[0].mxu0 %v72
    %v206 = vpop.f32.mrb[0].mxu0
    %v207 = vadd.f32 0.0, %v206
    %v208 = vpop.f32.mrb[0].mxu0
    %209 = vmatprep.mubr.f32.mxu0 0.0
    %210 = vmatmul.mubr.f32.gmra.mrb[0].mxu0 %v73
    %v211 = vpop.f32.mrb[0].mxu0
    %v212 = vadd.f32 0.0, %v211
    %v213 = vpop.f32.mrb[0].mxu0
    %214 = vmatprep.mubr.f32.mxu0 0.0
    %215 = vmatmul.mubr.f32.gmra.mrb[0].mxu0 %v74
    %v216 = vpop.f32.mrb[0].mxu0
    %v217 = vadd.f32 0.0, %v216
    %v218 = vpop.f32.mrb[0].mxu0
    %219 = vmatprep.mubr.f32.mxu0 0.0
    %220 = vmatmul.mubr.f32.gmra.mrb[0].mxu0 %v75
    %v221 = vpop.f32.mrb[0].mxu0
    %v222 = vadd.f32 0.0, %v221
    %v223 = vpop.f32.mrb[0].mxu0
    %224 = vmatprep.mubr.f32.mxu0 0.0
    %225 = vmatmul.mubr.f32.gmra.mrb[0].mxu0 %v76
    %v226 = vpop.f32.mrb[0].mxu0
    %v227 = vadd.f32 0.0, %v226
    %v228 = vpop.f32.mrb[0].mxu0
    %229 = vmatprep.mubr.f32.mxu0 0.0
    %230 = vmatmul.mubr.f32.gmra.mrb[0].mxu0 %v77
    %v231 = vpop.f32.mrb[0].mxu0
    %v232 = vadd.f32 0.0, %v231
    %v233 = vpop.f32.mrb[0].mxu0
    %234 = vmatprep.mubr.f32.mxu0 0.0
    %235 = vmatmul.mubr.f32.gmra.mrb[0].mxu0 %v78
    %v236 = vpop.f32.mrb[0].mxu0
    %v237 = vadd.f32 0.0, %v236
    %v238 = vpop.f32.mrb[0].mxu0
    %239 = vdwg.mxu0
    %v240 = vld [vmem:[%s3] sm:$0x1]
    %v241 = vld [vmem:[%s3 + $0x1] sm:$0x1]
    %v242 = vadd.f32 %v162, %v167
    %v243 = vadd.f32 %v242, %v172
    %v244 = vadd.f32 %v243, %v177
    %v245 = vadd.f32 %v244, %v182
    %v246 = vadd.f32 %v245, %v187
    %v247 = vadd.f32 %v246, %v192
    %v248 = vadd.f32 %v247, %v197
    %v249 = vadd.f32 %v248, %v202
    %v250 = vadd.f32 %v249, %v207
    %v251 = vadd.f32 %v250, %v212
    %v252 = vadd.f32 %v251, %v217
    %v253 = vadd.f32 %v252, %v222
    %v254 = vadd.f32 %v253, %v227
    %v255 = vadd.f32 %v254, %v232
    %v256 = vadd.f32 %v255, %v237
    %v257 = vrot.slane %v256, 4
    %v258 = vadd.f32 %v256, %v257
    %v259 = vrot.slane %v258, 2
    %v260 = vadd.f32 %v258, %v259
    %v261 = vrot.slane %v260, 1
    %v262 = vadd.f32 %v260, %v261
    %v263 = vmul.f32 %v262, 0.0078125
    %v264 = vmul.f32 %v162, %v162
    %v265 = vmul.f32 %v167, %v167
    %v266 = vmul.f32 %v172, %v172
    %v267 = vmul.f32 %v177, %v177
    %v268 = vmul.f32 %v182, %v182
    %v269 = vmul.f32 %v187, %v187
    %v270 = vmul.f32 %v192, %v192
    %v271 = vmul.f32 %v197, %v197
    %v272 = vmul.f32 %v202, %v202
    %v273 = vmul.f32 %v207, %v207
    %v274 = vmul.f32 %v212, %v212
    %v275 = vmul.f32 %v217, %v217
    %v276 = vmul.f32 %v222, %v222
    %v277 = vmul.f32 %v227, %v227
    %v278 = vmul.f32 %v232, %v232
    %v279 = vmul.f32 %v237, %v237
    %v280 = vadd.f32 %v264, %v265
    %v281 = vadd.f32 %v280, %v266
    %v282 = vadd.f32 %v281, %v267
    %v283 = vadd.f32 %v282, %v268
    %v284 = vadd.f32 %v283, %v269
    %v285 = vadd.f32 %v284, %v270
    %v286 = vadd.f32 %v285, %v271
    %v287 = vadd.f32 %v286, %v272
    %v288 = vadd.f32 %v287, %v273
    %v289 = vadd.f32 %v288, %v274
    %v290 = vadd.f32 %v289, %v275
    %v291 = vadd.f32 %v290, %v276
    %v292 = vadd.f32 %v291, %v277
    %v293 = vadd.f32 %v292, %v278
    %v294 = vadd.f32 %v293, %v279
    %v295 = vrot.slane %v294, 4
    %v296 = vadd.f32 %v294, %v295
    %v297 = vrot.slane %v296, 2
    %v298 = vadd.f32 %v296, %v297
    %v299 = vrot.slane %v298, 1
    %v300 = vadd.f32 %v298, %v299
    %v301 = vmul.f32 %v300, 0.0078125
    %v302 = vmul.f32 %v263, %v263
    %v303 = vsub.f32 %v301, %v302
    %v304 = vmax.f32 %v303, 0.0
    %v305 = vadd.f32 %v304, 1e-05
    %v306 = vrsqrt.pop %v305
    %v307 = vmul.f32 %v240, %v306
    %v308 = vmul.f32 %v263, %v307
    %v309 = vsub.f32 %v241, %v308
    %v310 = vlaneseq
    %v311 = vshrl.u32 %v310, 7
    %v312 = vsub.s32 0, %v311
    %v313 = vrot.slane %v307, %v312
    %v314 = vmul.f32 %v162, %v313
    %v315 = vmul.f32 %v167, %v313
    %v316 = vmul.f32 %v172, %v313
    %v317 = vmul.f32 %v177, %v313
    %v318 = vmul.f32 %v182, %v313
    %v319 = vmul.f32 %v187, %v313
    %v320 = vmul.f32 %v192, %v313
    %v321 = vmul.f32 %v197, %v313
    %v322 = vmul.f32 %v202, %v313
    %v323 = vmul.f32 %v207, %v313
    %v324 = vmul.f32 %v212, %v313
    %v325 = vmul.f32 %v217, %v313
    %v326 = vmul.f32 %v222, %v313
    %v327 = vmul.f32 %v227, %v313
    %v328 = vmul.f32 %v232, %v313
    %v329 = vmul.f32 %v237, %v313
    %v330 = vlaneseq
    %v331 = vshrl.u32 %v330, 7
    %v332 = vsub.s32 0, %v331
    %v333 = vrot.slane %v309, %v332
    %v334 = vadd.f32 %v314, %v333
    %v335 = vadd.f32 %v315, %v333
    %v336 = vadd.f32 %v316, %v333
    %v337 = vadd.f32 %v317, %v333
    %v338 = vadd.f32 %v318, %v333
    %v339 = vadd.f32 %v319, %v333
    %v340 = vadd.f32 %v320, %v333
    %v341 = vadd.f32 %v321, %v333
    %v342 = vadd.f32 %v322, %v333
    %v343 = vadd.f32 %v323, %v333
    %v344 = vadd.f32 %v324, %v333
    %v345 = vadd.f32 %v325, %v333
    %v346 = vadd.f32 %v326, %v333
    %v347 = vadd.f32 %v327, %v333
    %v348 = vadd.f32 %v328, %v333
    %v349 = vadd.f32 %v329, %v333
    %v350 = vmax.f32 %v334, 0.0
    %v351 = vmax.f32 %v335, 0.0
    %v352 = vmax.f32 %v336, 0.0
    %v353 = vmax.f32 %v337, 0.0
    %v354 = vmax.f32 %v338, 0.0
    %v355 = vmax.f32 %v339, 0.0
    %v356 = vmax.f32 %v340, 0.0
    %v357 = vmax.f32 %v341, 0.0
    %v358 = vmax.f32 %v342, 0.0
    %v359 = vmax.f32 %v343, 0.0
    %v360 = vmax.f32 %v344, 0.0
    %v361 = vmax.f32 %v345, 0.0
    %v362 = vmax.f32 %v346, 0.0
    %v363 = vmax.f32 %v347, 0.0
    %v364 = vmax.f32 %v348, 0.0
    %v365 = vmax.f32 %v349, 0.0
    %366 = vst [vmem:[#allocation9] sm:$0xff] %v350
    %367 = vst [vmem:[#allocation9 + $0x8] sm:$0xff] %v351
    %368 = vst [vmem:[#allocation9 + $0x10] sm:$0xff] %v352
    %369 = vst [vmem:[#allocation9 + $0x18] sm:$0xff] %v353
    %370 = vst [vmem:[#allocation9 + $0x20] sm:$0xff] %v354
    %371 = vst [vmem:[#allocation9 + $0x28] sm:$0xff] %v355
    %372 = vst [vmem:[#allocation9 + $0x30] sm:$0xff] %v356
    %373 = vst [vmem:[#allocation9 + $0x38] sm:$0xff] %v357
    %374 = vst [vmem:[#allocation9 + $0x40] sm:$0xff] %v358
    %375 = vst [vmem:[#allocation9 + $0x48] sm:$0xff] %v359
    %376 = vst [vmem:[#allocation9 + $0x50] sm:$0xff] %v360
    %377 = vst [vmem:[#allocation9 + $0x58] sm:$0xff] %v361
    %378 = vst [vmem:[#allocation9 + $0x60] sm:$0xff] %v362
    %379 = vst [vmem:[#allocation9 + $0x68] sm:$0xff] %v363
    %380 = vst [vmem:[#allocation9 + $0x70] sm:$0xff] %v364
    %381 = vst [vmem:[#allocation9 + $0x78] sm:$0xff] %v365
    %v382 = vld [vmem:[#allocation7] sm:$0xff]
    %v383 = vld [vmem:[#allocation7 + $0x8] sm:$0xff]
    %v384 = vld [vmem:[#allocation7 + $0x10] sm:$0xff]
    %v385 = vld [vmem:[#allocation7 + $0x18] sm:$0xff]
    %v386 = vld [vmem:[#allocation7 + $0x20] sm:$0xff]
    %v387 = vld [vmem:[#allocation7 + $0x28] sm:$0xff]
    %v388 = vld [vmem:[#allocation7 + $0x30] sm:$0xff]
    %v389 = vld [vmem:[#allocation7 + $0x38] sm:$0xff]
    %v390 = vld [vmem:[#allocation7 + $0x40] sm:$0xff]
    %v391 = vld [vmem:[#allocation7 + $0x48] sm:$0xff]
    %v392 = vld [vmem:[#allocation7 + $0x50] sm:$0xff]
    %v393 = vld [vmem:[#allocation7 + $0x58] sm:$0xff]
    %v394 = vld [vmem:[#allocation7 + $0x60] sm:$0xff]
    %v395 = vld [vmem:[#allocation7 + $0x68] sm:$0xff]
    %v396 = vld [vmem:[#allocation7 + $0x70] sm:$0xff]
    %v397 = vld [vmem:[#allocation7 + $0x78] sm:$0xff]
    %398 = vmatprep.subr.mxu0 0.0
    %399 = vmatpush1.xpose.msra.mxu0 %v382
    %400 = vmatprep.subr.mxu0 0.0
    %401 = vmatpush1.xpose.msra.mxu0 %v383
    %402 = vmatprep.subr.mxu0 0.0
    %403 = vmatpush1.xpose.msra.mxu0 %v384
    %404 = vmatprep.subr.mxu0 0.0
    %405 = vmatpush1.xpose.msra.mxu0 %v385
    %406 = vmatprep.subr.mxu0 0.0
    %407 = vmatpush1.xpose.msra.mxu0 %v386
    %408 = vmatprep.subr.mxu0 0.0
    %409 = vmatpush1.xpose.msra.mxu0 %v387
    %410 = vmatprep.subr.mxu0 0.0
    %411 = vmatpush1.xpose.msra.mxu0 %v388
    %412 = vmatprep.subr.mxu0 0.0
    %413 = vmatpush1.xpose.msra.mxu0 %v389
    %414 = vmatprep.subr.mxu0 0.0
    %415 = vmatpush1.xpose.msra.mxu0 %v390
    %416 = vmatprep.subr.mxu0 0.0
    %417 = vmatpush1.xpose.msra.mxu0 %v391
    %418 = vmatprep.subr.mxu0 0.0
    %419 = vmatpush1.xpose.msra.mxu0 %v392
    %420 = vmatprep.subr.mxu0 0.0
    %421 = vmatpush1.xpose.msra.mxu0 %v393
    %422 = vmatprep.subr.mxu0 0.0
    %423 = vmatpush1.xpose.msra.mxu0 %v394
    %424 = vmatprep.subr.mxu0 0.0
    %425 = vmatpush1.xpose.msra.mxu0 %v395
    %426 = vmatprep.subr.mxu0 0.0
    %427 = vmatpush1.xpose.msra.mxu0 %v396
    %428 = vmatprep.subr.mxu0 0.0
    %429 = vmatpush1.xpose.msra.mxu0 %v397
    %430 = vmatprep.subr.mxu0 0.0
    %431 = vmatpush1.xpose.msra.mxu0 0.0
    %432 = vmatprep.subr.mxu0 0.0
    %433 = vmatpush1.xpose.msra.mxu0 0.0
    %434 = vmatprep.subr.mxu0 0.0
    %435 = vmatpush1.xpose.msra.mxu0 0.0
    %436 = vmatprep.subr.mxu0 0.0
    %437 = vmatpush1.xpose.msra.mxu0 0.0
    %438 = vmatprep.subr.mxu0 0.0
    %439 = vmatpush1.xpose.msra.mxu0 0.0
    %440 = vmatprep.subr.mxu0 0.0
    %441 = vmatpush1.xpose.msra.mxu0 0.0
    %442 = vmatprep.subr.mxu0 0.0
    %443 = vmatpush1.xpose.msra.mxu0 0.0
    %444 = vmatprep.subr.mxu0 0.0
    %445 = vmatpush1.xpose.msra.mxu0 0.0
    %446 = vmatprep.subr.mxu0 0.0
    %447 = vmatpush1.xpose.msra.mxu0 0.0
    %448 = vmatprep.subr.mxu0 0.0
    %449 = vmatpush1.xpose.msra.mxu0 0.0
    %450 = vmatprep.subr.mxu0 0.0
    %451 = vmatpush1.xpose.msra.mxu0 0.0
    %452 = vmatprep.subr.mxu0 0.0
    %453 = vmatpush1.xpose.msra.mxu0 0.0
    %454 = vmatprep.subr.mxu0 0.0
    %455 = vmatpush1.xpose.msra.mxu0 0.0
    %456 = vmatprep.subr.mxu0 0.0
    %457 = vmatpush1.xpose.msra.mxu0 0.0
    %458 = vmatprep.subr.mxu0 0.0
    %459 = vmatpush1.xpose.msra.mxu0 0.0
    %460 = vmatprep.subr.mxu0 0.0
    %461 = vmatpush1.xpose.msra.mxu0 0.0
    %462 = vmatprep.mubr.f32.mxu0 0.0
    %463 = vmatmul.mubr.f32.gmra.mrb[0].mxu0 %v350
    %v464 = vpop.f32.mrb[0].mxu0
    %v465 = vadd.f32 0.0, %v464
    %v466 = vpop.f32.mrb[0].mxu0
    %467 = vmatprep.mubr.f32.mxu0 0.0
    %468 = vmatmul.mubr.f32.gmra.mrb[0].mxu0 %v351
    %v469 = vpop.f32.mrb[0].mxu0
    %v470 = vadd.f32 0.0, %v469
    %v471 = vpop.f32.mrb[0].mxu0
    %472 = vmatprep.mubr.f32.mxu0 0.0
    %473 = vmatmul.mubr.f32.gmra.mrb[0].mxu0 %v352
    %v474 = vpop.f32.mrb[0].mxu0
    %v475 = vadd.f32 0.0, %v474
    %v476 = vpop.f32.mrb[0].mxu0
    %477 = vmatprep.mubr.f32.mxu0 0.0
    %478 = vmatmul.mubr.f32.gmra.mrb[0].mxu0 %v353
    %v479 = vpop.f32.mrb[0].mxu0
    %v480 = vadd.f32 0.0, %v479
    %v481 = vpop.f32.mrb[0].mxu0
    %482 = vmatprep.mubr.f32.mxu0 0.0
    %483 = vmatmul.mubr.f32.gmra.mrb[0].mxu0 %v354
    %v484 = vpop.f32.mrb[0].mxu0
    %v485 = vadd.f32 0.0, %v484
    %v486 = vpop.f32.mrb[0].mxu0
    %487 = vmatprep.mubr.f32.mxu0 0.0
    %488 = vmatmul.mubr.f32.gmra.mrb[0].mxu0 %v355
    %v489 = vpop.f32.mrb[0].mxu0
    %v490 = vadd.f32 0.0, %v489
    %v491 = vpop.f32.mrb[0].mxu0
    %492 = vmatprep.mubr.f32.mxu0 0.0
    %493 = vmatmul.mubr.f32.gmra.mrb[0].mxu0 %v356
    %v494 = vpop.f32.mrb[0].mxu0
    %v495 = vadd.f32 0.0, %v494
    %v496 = vpop.f32.mrb[0].mxu0
    %497 = vmatprep.mubr.f32.mxu0 0.0
    %498 = vmatmul.mubr.f32.gmra.mrb[0].mxu0 %v357
    %v499 = vpop.f32.mrb[0].mxu0
    %v500 = vadd.f32 0.0, %v499
    %v501 = vpop.f32.mrb[0].mxu0
    %502 = vmatprep.mubr.f32.mxu0 0.0
    %503 = vmatmul.mubr.f32.gmra.mrb[0].mxu0 %v358
    %v504 = vpop.f32.mrb[0].mxu0
    %v505 = vadd.f32 0.0, %v504
    %v506 = vpop.f32.mrb[0].mxu0
    %507 = vmatprep.mubr.f32.mxu0 0.0
    %508 = vmatmul.mubr.f32.gmra.mrb[0].mxu0 %v359
    %v509 = vpop.f32.mrb[0].mxu0
    %v510 = vadd.f32 0.0, %v509
    %v511 = vpop.f32.mrb[0].mxu0
    %512 = vmatprep.mubr.f32.mxu0 0.0
    %513 = vmatmul.mubr.f32.gmra.mrb[0].mxu0 %v360
    %v514 = vpop.f32.mrb[0].mxu0
    %v515 = vadd.f32 0.0, %v514
    %v516 = vpop.f32.mrb[0].mxu0
    %517 = vmatprep.mubr.f32.mxu0 0.0
    %518 = vmatmul.mubr.f32.gmra.mrb[0].mxu0 %v361
    %v519 = vpop.f32.mrb[0].mxu0
    %v520 = vadd.f32 0.0, %v519
    %v521 = vpop.f32.mrb[0].mxu0
    %522 = vmatprep.mubr.f32.mxu0 0.0
    %523 = vmatmul.mubr.f32.gmra.mrb[0].mxu0 %v362
    %v524 = vpop.f32.mrb[0].mxu0
    %v525 = vadd.f32 0.0, %v524
    %v526 = vpop.f32.mrb[0].mxu0
    %527 = vmatprep.mubr.f32.mxu0 0.0
    %528 = vmatmul.mubr.f32.gmra.mrb[0].mxu0 %v363
    %v529 = vpop.f32.mrb[0].mxu0
    %v530 = vadd.f32 0.0, %v529
    %v531 = vpop.f32.mrb[0].mxu0
    %532 = vmatprep.mubr.f32.mxu0 0.0
    %533 = vmatmul.mubr.f32.gmra.mrb[0].mxu0 %v364
    %v534 = vpop.f32.mrb[0].mxu0
    %v535 = vadd.f32 0.0, %v534
    %v536 = vpop.f32.mrb[0].mxu0
    %537 = vmatprep.mubr.f32.mxu0 0.0
    %538 = vmatmul.mubr.f32.gmra.mrb[0].mxu0 %v365
    %v539 = vpop.f32.mrb[0].mxu0
    %v540 = vadd.f32 0.0, %v539
    %v541 = vpop.f32.mrb[0].mxu0
    %542 = vdwg.mxu0
    %v543 = vld [vmem:[%s3 + $0x2] sm:$0x1]
    %v544 = vld [vmem:[%s3 + $0x3] sm:$0x1]
    %v545 = vadd.f32 %v465, %v470
    %v546 = vadd.f32 %v545, %v475
    %v547 = vadd.f32 %v546, %v480
    %v548 = vadd.f32 %v547, %v485
    %v549 = vadd.f32 %v548, %v490
    %v550 = vadd.f32 %v549, %v495
    %v551 = vadd.f32 %v550, %v500
    %v552 = vadd.f32 %v551, %v505
    %v553 = vadd.f32 %v552, %v510
    %v554 = vadd.f32 %v553, %v515
    %v555 = vadd.f32 %v554, %v520
    %v556 = vadd.f32 %v555, %v525
    %v557 = vadd.f32 %v556, %v530
    %v558 = vadd.f32 %v557, %v535
    %v559 = vadd.f32 %v558, %v540
    %v560 = vrot.slane %v559, 4
    %v561 = vadd.f32 %v559, %v560
    %v562 = vrot.slane %v561, 2
    %v563 = vadd.f32 %v561, %v562
    %v564 = vrot.slane %v563, 1
    %v565 = vadd.f32 %v563, %v564
    %v566 = vmul.f32 %v565, 0.0078125
    %v567 = vmul.f32 %v465, %v465
    %v568 = vmul.f32 %v470, %v470
    %v569 = vmul.f32 %v475, %v475
    %v570 = vmul.f32 %v480, %v480
    %v571 = vmul.f32 %v485, %v485
    %v572 = vmul.f32 %v490, %v490
    %v573 = vmul.f32 %v495, %v495
    %v574 = vmul.f32 %v500, %v500
    %v575 = vmul.f32 %v505, %v505
    %v576 = vmul.f32 %v510, %v510
    %v577 = vmul.f32 %v515, %v515
    %v578 = vmul.f32 %v520, %v520
    %v579 = vmul.f32 %v525, %v525
    %v580 = vmul.f32 %v530, %v530
    %v581 = vmul.f32 %v535, %v535
    %v582 = vmul.f32 %v540, %v540
    %v583 = vadd.f32 %v567, %v568
    %v584 = vadd.f32 %v583, %v569
    %v585 = vadd.f32 %v584, %v570
    %v586 = vadd.f32 %v585, %v571
    %v587 = vadd.f32 %v586, %v572
    %v588 = vadd.f32 %v587, %v573
    %v589 = vadd.f32 %v588, %v574
    %v590 = vadd.f32 %v589, %v575
    %v591 = vadd.f32 %v590, %v576
    %v592 = vadd.f32 %v591, %v577
    %v593 = vadd.f32 %v592, %v578
    %v594 = vadd.f32 %v593, %v579
    %v595 = vadd.f32 %v594, %v580
    %v596 = vadd.f32 %v595, %v581
    %v597 = vadd.f32 %v596, %v582
    %v598 = vrot.slane %v597, 4
    %v599 = vadd.f32 %v597, %v598
    %v600 = vrot.slane %v599, 2
    %v601 = vadd.f32 %v599, %v600
    %v602 = vrot.slane %v601, 1
    %v603 = vadd.f32 %v601, %v602
    %v604 = vmul.f32 %v603, 0.0078125
    %v605 = vmul.f32 %v566, %v566
    %v606 = vsub.f32 %v604, %v605
    %v607 = vmax.f32 %v606, 0.0
    %v608 = vadd.f32 %v607, 1e-05
    %v609 = vrsqrt.pop %v608
    %v610 = vmul.f32 %v543, %v609
    %v611 = vmul.f32 %v566, %v610
    %v612 = vsub.f32 %v544, %v611
    %v613 = vlaneseq
    %v614 = vshrl.u32 %v613, 7
    %v615 = vsub.s32 0, %v614
    %v616 = vrot.slane %v610, %v615
    %v617 = vmul.f32 %v465, %v616
    %v618 = vmul.f32 %v470, %v616
    %v619 = vmul.f32 %v475, %v616
    %v620 = vmul.f32 %v480, %v616
    %v621 = vmul.f32 %v485, %v616
    %v622 = vmul.f32 %v490, %v616
    %v623 = vmul.f32 %v495, %v616
    %v624 = vmul.f32 %v500, %v616
    %v625 = vmul.f32 %v505, %v616
    %v626 = vmul.f32 %v510, %v616
    %v627 = vmul.f32 %v515, %v616
    %v628 = vmul.f32 %v520, %v616
    %v629 = vmul.f32 %v525, %v616
    %v630 = vmul.f32 %v530, %v616
    %v631 = vmul.f32 %v535, %v616
    %v632 = vmul.f32 %v540, %v616
    %v633 = vlaneseq
    %v634 = vshrl.u32 %v633, 7
    %v635 = vsub.s32 0, %v634
    %v636 = vrot.slane %v612, %v635
    %v637 = vadd.f32 %v617, %v636
    %v638 = vadd.f32 %v618, %v636
    %v639 = vadd.f32 %v619, %v636
    %v640 = vadd.f32 %v620, %v636
    %v641 = vadd.f32 %v621, %v636
    %v642 = vadd.f32 %v622, %v636
    %v643 = vadd.f32 %v623, %v636
    %v644 = vadd.f32 %v624, %v636
    %v645 = vadd.f32 %v625, %v636
    %v646 = vadd.f32 %v626, %v636
    %v647 = vadd.f32 %v627, %v636
    %v648 = vadd.f32 %v628, %v636
    %v649 = vadd.f32 %v629, %v636
    %v650 = vadd.f32 %v630, %v636
    %v651 = vadd.f32 %v631, %v636
    %v652 = vadd.f32 %v632, %v636
    %v653 = vmax.f32 %v637, 0.0
    %v654 = vmax.f32 %v638, 0.0
    %v655 = vmax.f32 %v639, 0.0
    %v656 = vmax.f32 %v640, 0.0
    %v657 = vmax.f32 %v641, 0.0
    %v658 = vmax.f32 %v642, 0.0
    %v659 = vmax.f32 %v643, 0.0
    %v660 = vmax.f32 %v644, 0.0
    %v661 = vmax.f32 %v645, 0.0
    %v662 = vmax.f32 %v646, 0.0
    %v663 = vmax.f32 %v647, 0.0
    %v664 = vmax.f32 %v648, 0.0
    %v665 = vmax.f32 %v649, 0.0
    %v666 = vmax.f32 %v650, 0.0
    %v667 = vmax.f32 %v651, 0.0
    %v668 = vmax.f32 %v652, 0.0
    %669 = vst [vmem:[#allocation11] sm:$0xff] %v653
    %670 = vst [vmem:[#allocation11 + $0x8] sm:$0xff] %v654
    %671 = vst [vmem:[#allocation11 + $0x10] sm:$0xff] %v655
    %672 = vst [vmem:[#allocation11 + $0x18] sm:$0xff] %v656
    %673 = vst [vmem:[#allocation11 + $0x20] sm:$0xff] %v657
    %674 = vst [vmem:[#allocation11 + $0x28] sm:$0xff] %v658
    %675 = vst [vmem:[#allocation11 + $0x30] sm:$0xff] %v659
    %676 = vst [vmem:[#allocation11 + $0x38] sm:$0xff] %v660
    %677 = vst [vmem:[#allocation11 + $0x40] sm:$0xff] %v661
    %678 = vst [vmem:[#allocation11 + $0x48] sm:$0xff] %v662
    %679 = vst [vmem:[#allocation11 + $0x50] sm:$0xff] %v663
    %680 = vst [vmem:[#allocation11 + $0x58] sm:$0xff] %v664
    %681 = vst [vmem:[#allocation11 + $0x60] sm:$0xff] %v665
    %682 = vst [vmem:[#allocation11 + $0x68] sm:$0xff] %v666
    %683 = vst [vmem:[#allocation11 + $0x70] sm:$0xff] %v667
    %684 = vst [vmem:[#allocation11 + $0x78] sm:$0xff] %v668
    %v685 = vld [vmem:[#allocation2] sm:$0xff]
    %v686 = vld [vmem:[#allocation2 + $0x8] sm:$0xff]
    %v687 = vld [vmem:[#allocation2 + $0x10] sm:$0xff]
    %v688 = vld [vmem:[#allocation2 + $0x18] sm:$0xff]
    %v689 = vld [vmem:[#allocation2 + $0x20] sm:$0xff]
    %v690 = vld [vmem:[#allocation2 + $0x28] sm:$0xff]
    %v691 = vld [vmem:[#allocation2 + $0x30] sm:$0xff]
    %v692 = vld [vmem:[#allocation2 + $0x38] sm:$0xff]
    %v693 = vld [vmem:[#allocation2 + $0x40] sm:$0xff]
    %v694 = vld [vmem:[#allocation2 + $0x48] sm:$0xff]
    %v695 = vld [vmem:[#allocation2 + $0x50] sm:$0xff]
    %v696 = vld [vmem:[#allocation2 + $0x58] sm:$0xff]
    %v697 = vld [vmem:[#allocation2 + $0x60] sm:$0xff]
    %v698 = vld [vmem:[#allocation2 + $0x68] sm:$0xff]
    %v699 = vld [vmem:[#allocation2 + $0x70] sm:$0xff]
    %v700 = vld [vmem:[#allocation2 + $0x78] sm:$0xff]
    %v701 = vadd.f32 %v685, %v653
    %v702 = vadd.f32 %v686, %v654
    %v703 = vadd.f32 %v687, %v655
    %v704 = vadd.f32 %v688, %v656
    %v705 = vadd.f32 %v689, %v657
    %v706 = vadd.f32 %v690, %v658
    %v707 = vadd.f32 %v691, %v659
    %v708 = vadd.f32 %v692, %v660
    %v709 = vadd.f32 %v693, %v661
    %v710 = vadd.f32 %v694, %v662
    %v711 = vadd.f32 %v695, %v663
    %v712 = vadd.f32 %v696, %v664
    %v713 = vadd.f32 %v697, %v665
    %v714 = vadd.f32 %v698, %v666
    %v715 = vadd.f32 %v699, %v667
    %v716 = vadd.f32 %v700, %v668
    %717 = vst [vmem:[#allocation8] sm:$0xff] %v701
    %718 = vst [vmem:[#allocation8 + $0x8] sm:$0xff] %v702
    %719 = vst [vmem:[#allocation8 + $0x10] sm:$0xff] %v703
    %720 = vst [vmem:[#allocation8 + $0x18] sm:$0xff] %v704
    %721 = vst [vmem:[#allocation8 + $0x20] sm:$0xff] %v705
    %722 = vst [vmem:[#allocation8 + $0x28] sm:$0xff] %v706
    %723 = vst [vmem:[#allocation8 + $0x30] sm:$0xff] %v707
    %724 = vst [vmem:[#allocation8 + $0x38] sm:$0xff] %v708
    %725 = vst [vmem:[#allocation8 + $0x40] sm:$0xff] %v709
    %726 = vst [vmem:[#allocation8 + $0x48] sm:$0xff] %v710
    %727 = vst [vmem:[#allocation8 + $0x50] sm:$0xff] %v711
    %728 = vst [vmem:[#allocation8 + $0x58] sm:$0xff] %v712
    %729 = vst [vmem:[#allocation8 + $0x60] sm:$0xff] %v713
    %730 = vst [vmem:[#allocation8 + $0x68] sm:$0xff] %v714
    %731 = vst [vmem:[#allocation8 + $0x70] sm:$0xff] %v715
    %732 = vst [vmem:[#allocation8 + $0x78] sm:$0xff] %v716
    // Predicated region
    $region30: #{tpu_custom_call.1} parent=1 // pred_check
      _
    $region31: #{tpu_custom_call.1} parent=1 // pred_check_branch
      %734 = sbr.rel (0) target = $region33
    $region32: #{tpu_custom_call.1} parent=1 // pred_region
      %s736 = ssub.s32 2048, 2048
      %737 = vsyncadd [#allocation4], %s736
      %s738 = sshll.u32 [#allocation8], 4
      %s739 = int_to_ptr.vmem [resolvable:$true] %s738
      %744 = dma.vmem_to_hbm [thread:$0]  %s739, 2048, %s4, [#allocation4], 128, 128, 8
    $region33: #{tpu_custom_call.1} parent=1 // pred_fallthru
      _
    // Predicated region
    $region34: #{tpu_custom_call.1} parent=1 // pred_check
      _
    $region35: #{tpu_custom_call.1} parent=1 // pred_check_branch
      %746 = sbr.rel (0) target = $region37
    $region36: #{tpu_custom_call.1} parent=1 // pred_region
      %s748 = ssub.s32 2048, 2048
      %749 = vsyncadd [#allocation10], %s748
      %s750 = sshll.u32 [#allocation9], 4
      %s751 = int_to_ptr.vmem [resolvable:$true] %s750
      %756 = dma.vmem_to_hbm [thread:$0]  %s751, 2048, %s5, [#allocation10], 128, 128, 8
    $region37: #{tpu_custom_call.1} parent=1 // pred_fallthru
      _
    // Predicated region
    $region38: #{tpu_custom_call.1} parent=1 // pred_check
      _
    $region39: #{tpu_custom_call.1} parent=1 // pred_check_branch
      %758 = sbr.rel (0) target = $region41
    $region40: #{tpu_custom_call.1} parent=1 // pred_region
      %s760 = ssub.s32 2048, 2048
      %761 = vsyncadd [#allocation10], %s760
      %s762 = sshll.u32 [#allocation11], 4
      %s763 = int_to_ptr.vmem [resolvable:$true] %s762
      %768 = dma.vmem_to_hbm [thread:$0]  %s763, 2048, %s6, [#allocation10], 128, 128, 8
    $region41: #{tpu_custom_call.1} parent=1 // pred_fallthru
      _
    // Predicated region
    $region42: #{tpu_custom_call.1} parent=1 // pred_check
      _
    $region43: #{tpu_custom_call.1} parent=1 // pred_check_branch
      %770 = sbr.rel (0) target = $region45
    $region44: #{tpu_custom_call.1} parent=1 // pred_region
      %771 = dma.done [#allocation4], 2048
    $region45: #{tpu_custom_call.1} parent=1 // pred_fallthru
      _
    // Predicated region
    $region46: #{tpu_custom_call.1} parent=1 // pred_check
      _
    $region47: #{tpu_custom_call.1} parent=1 // pred_check_branch
      %773 = sbr.rel (0) target = $region49
    $region48: #{tpu_custom_call.1} parent=1 // pred_region
      %774 = dma.done [#allocation10], 2048
    $region49: #{tpu_custom_call.1} parent=1 // pred_fallthru
      _
    // Predicated region
    $region50: #{tpu_custom_call.1} parent=1 // pred_check
      _
    $region51: #{tpu_custom_call.1} parent=1 // pred_check_branch
      %776 = sbr.rel (0) target = $region53
    $region52: #{tpu_custom_call.1} parent=1 // pred_region
      %777 = dma.done [#allocation10], 2048
    $region53: #{tpu_custom_call.1} parent=1 // pred_fallthru
      _
    %778 = vsyncpa [#allocation3], 1
    %779 = vsyncpa [#allocation6], 1
    %780 = vsyncpa [#allocation4], 1
    %781 = vsyncpa [#allocation10], 1

// kernel: tpu_custom_call.1
$region0: #{tpu_custom_call.1}
  #allocation0 [shape = 'u32[]', space=smem, size = 0x4, offset = 0x4, fixed_abs, tag = 'smem constant byte address 0x4 - core index']
  #allocation1 [shape = 'u32[144,128]{1,0:T(1,128)}', space=vmem, size = 0x12000, scoped, tag = 'internal scratch']
  %s0 = inlined_call_operand.hbm [shape: f32[128,128], index: 0, kind: input, shape index: {}]
  %s1 = inlined_call_operand.hbm [shape: f32[128,128], index: 1, kind: input, shape index: {}]
  %s2 = inlined_call_operand.hbm [shape: f32[128,128], index: 2, kind: input, shape index: {}]
  %s3 = inlined_call_operand.vmem [shape: f32[4,128], index: 3, kind: input, shape index: {}]
  %s4 = inlined_call_operand.hbm [shape: f32[128,128], index: 4, kind: output, shape index: {0}]
  %s5 = inlined_call_operand.hbm [shape: f32[128,128], index: 5, kind: output, shape index: {1}]
  %s6 = inlined_call_operand.hbm [shape: f32[128,128], index: 6, kind: output, shape index: {2}]
  %7 = xla_tuple %s4, %s5, %s6
  %s8 = sld [smem:[#allocation0]]
  $region54: #{tpu_custom_call.1} parent=0
    _
  %s10 = ssub.s32 1, %s8
  %s11 = scalar_select 0, %s10, %s8
  $region1: #{tpu_custom_call.1} parent=0
    #allocation2 [shape = 'u8[65536]{0}', space=vmem, size = 0x10000, scoped, tag = 'input window, operand 0, single buffered']
    #allocation3 [shape = 's32[1]{0}', space=sflag, size = 0x4, scoped, tag = 'scoped memory for tpu_custom_call.1']
    #allocation4 [shape = 's32[1]{0}', space=sflag, size = 0x4, scoped, tag = 'scoped memory for tpu_custom_call.1']
    #allocation5 [shape = 'u8[65536]{0}', space=vmem, size = 0x10000, scoped, tag = 'input window, operand 1, single buffered']
    #allocation6 [shape = 's32[1]{0}', space=sflag, size = 0x4, scoped, tag = 'scoped memory for tpu_custom_call.1']
    #allocation7 [shape = 'u8[65536]{0}', space=vmem, size = 0x10000, scoped, tag = 'input window, operand 2, single buffered']
    #allocation8 [shape = 'u8[65536]{0}', space=vmem, size = 0x10000, scoped, tag = 'output window, operand 0, single buffered']
    #allocation9 [shape = 'u8[65536]{0}', space=vmem, size = 0x10000, scoped, tag = 'output window, operand 1, single buffered']
    #allocation10 [shape = 's32[1]{0}', space=sflag, size = 0x4, scoped, tag = 'scoped memory for tpu_custom_call.1']
    #allocation11 [shape = 'u8[65536]{0}', space=vmem, size = 0x10000, scoped, tag = 'output window, operand 2, single buffered']
    %12 = vsyncpa [#allocation3], 0
    %13 = vsyncpa [#allocation6], 0
    %14 = vsyncpa [#allocation4], 0
    %15 = vsyncpa [#allocation10], 0
    // Predicated region
    $region2: #{tpu_custom_call.1} parent=1 // pred_check
      _
    $region3: #{tpu_custom_call.1} parent=1 // pred_check_branch
      %17 = sbr.rel (0) target = $region5
    $region4: #{tpu_custom_call.1} parent=1 // pred_region
      %s19 = ssub.s32 2048, 2048
      %20 = vsyncadd [#allocation3], %s19
      %s21 = sshll.u32 [#allocation2], 4
      %s22 = int_to_ptr.vmem [resolvable:$true] %s21
      %27 = dma.hbm_to_vmem [thread:$0]  %s0, 2048, %s22, [#allocation3], 128, 128, 8
    $region5: #{tpu_custom_call.1} parent=1 // pred_fallthru
      _
    // Predicated region
    $region6: #{tpu_custom_call.1} parent=1 // pred_check
      _
    $region7: #{tpu_custom_call.1} parent=1 // pred_check_branch
      %29 = sbr.rel (0) target = $region9
    $region8: #{tpu_custom_call.1} parent=1 // pred_region
      %s31 = ssub.s32 2048, 2048
      %32 = vsyncadd [#allocation6], %s31
      %s33 = sshll.u32 [#allocation5], 4
      %s34 = int_to_ptr.vmem [resolvable:$true] %s33
      %39 = dma.hbm_to_vmem [thread:$0]  %s1, 2048, %s34, [#allocation6], 128, 128, 8
    $region9: #{tpu_custom_call.1} parent=1 // pred_fallthru
      _
    // Predicated region
    $region10: #{tpu_custom_call.1} parent=1 // pred_check
      _
    $region11: #{tpu_custom_call.1} parent=1 // pred_check_branch
      %41 = sbr.rel (0) target = $region13
    $region12: #{tpu_custom_call.1} parent=1 // pred_region
      %s43 = ssub.s32 2048, 2048
      %44 = vsyncadd [#allocation6], %s43
      %s45 = sshll.u32 [#allocation7], 4
      %s46 = int_to_ptr.vmem [resolvable:$true] %s45
      %51 = dma.hbm_to_vmem [thread:$0]  %s2, 2048, %s46, [#allocation6], 128, 128, 8
    $region13: #{tpu_custom_call.1} parent=1 // pred_fallthru
      _
    // Predicated region
    $region14: #{tpu_custom_call.1} parent=1 // pred_check
      _
    $region15: #{tpu_custom_call.1} parent=1 // pred_check_branch
      %53 = sbr.rel (0) target = $region17
    $region16: #{tpu_custom_call.1} parent=1 // pred_region
      _
    $region17: #{tpu_custom_call.1} parent=1 // pred_fallthru
      _
    // Predicated region
    $region18: #{tpu_custom_call.1} parent=1 // pred_check
      _
    $region19: #{tpu_custom_call.1} parent=1 // pred_check_branch
      %55 = sbr.rel (0) target = $region21
    $region20: #{tpu_custom_call.1} parent=1 // pred_region
      %56 = dma.done [#allocation3], 2048
    $region21: #{tpu_custom_call.1} parent=1 // pred_fallthru
      _
    // Predicated region
    $region22: #{tpu_custom_call.1} parent=1 // pred_check
      _
    $region23: #{tpu_custom_call.1} parent=1 // pred_check_branch
      %58 = sbr.rel (0) target = $region25
    $region24: #{tpu_custom_call.1} parent=1 // pred_region
      %59 = dma.done [#allocation6], 2048
    $region25: #{tpu_custom_call.1} parent=1 // pred_fallthru
      _
    // Predicated region
    $region26: #{tpu_custom_call.1} parent=1 // pred_check
      _
    $region27: #{tpu_custom_call.1} parent=1 // pred_check_branch
      %61 = sbr.rel (0) target = $region29
    $region28: #{tpu_custom_call.1} parent=1 // pred_region
      %62 = dma.done [#allocation6], 2048
    $region29: #{tpu_custom_call.1} parent=1 // pred_fallthru
      _
    %v63 = vld [vmem:[#allocation2] sm:$0xff]
    %v64 = vld [vmem:[#allocation2 + $0x8] sm:$0xff]
    %v65 = vld [vmem:[#allocation2 + $0x10] sm:$0xff]
    %v66 = vld [vmem:[#allocation2 + $0x18] sm:$0xff]
    %v67 = vld [vmem:[#allocation2 + $0x20] sm:$0xff]
    %v68 = vld [vmem:[#allocation2 + $0x28] sm:$0xff]
    %v69 = vld [vmem:[#allocation2 + $0x30] sm:$0xff]
    %v70 = vld [vmem:[#allocation2 + $0x38] sm:$0xff]
    %v71 = vld [vmem:[#allocation2 + $0x40] sm:$0xff]
    %v72 = vld [vmem:[#allocation2 + $0x48] sm:$0xff]
    %v73 = vld [vmem:[#allocation2 + $0x50] sm:$0xff]
    %v74 = vld [vmem:[#allocation2 + $0x58] sm:$0xff]
    %v75 = vld [vmem:[#allocation2 + $0x60] sm:$0xff]
    %v76 = vld [vmem:[#allocation2 + $0x68] sm:$0xff]
    %v77 = vld [vmem:[#allocation2 + $0x70] sm:$0xff]
    %v78 = vld [vmem:[#allocation2 + $0x78] sm:$0xff]
    %v79 = vld [vmem:[#allocation5] sm:$0xff]
    %v80 = vld [vmem:[#allocation5 + $0x8] sm:$0xff]
    %v81 = vld [vmem:[#allocation5 + $0x10] sm:$0xff]
    %v82 = vld [vmem:[#allocation5 + $0x18] sm:$0xff]
    %v83 = vld [vmem:[#allocation5 + $0x20] sm:$0xff]
    %v84 = vld [vmem:[#allocation5 + $0x28] sm:$0xff]
    %v85 = vld [vmem:[#allocation5 + $0x30] sm:$0xff]
    %v86 = vld [vmem:[#allocation5 + $0x38] sm:$0xff]
    %v87 = vld [vmem:[#allocation5 + $0x40] sm:$0xff]
    %v88 = vld [vmem:[#allocation5 + $0x48] sm:$0xff]
    %v89 = vld [vmem:[#allocation5 + $0x50] sm:$0xff]
    %v90 = vld [vmem:[#allocation5 + $0x58] sm:$0xff]
    %v91 = vld [vmem:[#allocation5 + $0x60] sm:$0xff]
    %v92 = vld [vmem:[#allocation5 + $0x68] sm:$0xff]
    %v93 = vld [vmem:[#allocation5 + $0x70] sm:$0xff]
    %v94 = vld [vmem:[#allocation5 + $0x78] sm:$0xff]
    %95 = vmatprep.subr.mxu0 0.0
    %96 = vmatpush1.xpose.msra.mxu0 %v79
    %97 = vmatprep.subr.mxu0 0.0
    %98 = vmatpush1.xpose.msra.mxu0 %v80
    %99 = vmatprep.subr.mxu0 0.0
    %100 = vmatpush1.xpose.msra.mxu0 %v81
    %101 = vmatprep.subr.mxu0 0.0
    %102 = vmatpush1.xpose.msra.mxu0 %v82
    %103 = vmatprep.subr.mxu0 0.0
    %104 = vmatpush1.xpose.msra.mxu0 %v83
    %105 = vmatprep.subr.mxu0 0.0
    %106 = vmatpush1.xpose.msra.mxu0 %v84
    %107 = vmatprep.subr.mxu0 0.0
    %108 = vmatpush1.xpose.msra.mxu0 %v85
    %109 = vmatprep.subr.mxu0 0.0
    %110 = vmatpush1.xpose.msra.mxu0 %v86
    %111 = vmatprep.subr.mxu0 0.0
    %112 = vmatpush1.xpose.msra.mxu0 %v87
    %113 = vmatprep.subr.mxu0 0.0
    %114 = vmatpush1.xpose.msra.mxu0 %v88
    %115 = vmatprep.subr.mxu0 0.0
    %116 = vmatpush1.xpose.msra.mxu0 %v89
    %117 = vmatprep.subr.mxu0 0.0
    %118 = vmatpush1.xpose.msra.mxu0 %v90
    %119 = vmatprep.subr.mxu0 0.0
    %120 = vmatpush1.xpose.msra.mxu0 %v91
    %121 = vmatprep.subr.mxu0 0.0
    %122 = vmatpush1.xpose.msra.mxu0 %v92
    %123 = vmatprep.subr.mxu0 0.0
    %124 = vmatpush1.xpose.msra.mxu0 %v93
    %125 = vmatprep.subr.mxu0 0.0
    %126 = vmatpush1.xpose.msra.mxu0 %v94
    %127 = vmatprep.subr.mxu0 0.0
    %128 = vmatpush1.xpose.msra.mxu0 0.0
    %129 = vmatprep.subr.mxu0 0.0
    %130 = vmatpush1.xpose.msra.mxu0 0.0
    %131 = vmatprep.subr.mxu0 0.0
    %132 = vmatpush1.xpose.msra.mxu0 0.0
    %133 = vmatprep.subr.mxu0 0.0
    %134 = vmatpush1.xpose.msra.mxu0 0.0
    %135 = vmatprep.subr.mxu0 0.0
    %136 = vmatpush1.xpose.msra.mxu0 0.0
    %137 = vmatprep.subr.mxu0 0.0
    %138 = vmatpush1.xpose.msra.mxu0 0.0
    %139 = vmatprep.subr.mxu0 0.0
    %140 = vmatpush1.xpose.msra.mxu0 0.0
    %141 = vmatprep.subr.mxu0 0.0
    %142 = vmatpush1.xpose.msra.mxu0 0.0
    %143 = vmatprep.subr.mxu0 0.0
    %144 = vmatpush1.xpose.msra.mxu0 0.0
    %145 = vmatprep.subr.mxu0 0.0
    %146 = vmatpush1.xpose.msra.mxu0 0.0
    %147 = vmatprep.subr.mxu0 0.0
    %148 = vmatpush1.xpose.msra.mxu0 0.0
    %149 = vmatprep.subr.mxu0 0.0
    %150 = vmatpush1.xpose.msra.mxu0 0.0
    %151 = vmatprep.subr.mxu0 0.0
    %152 = vmatpush1.xpose.msra.mxu0 0.0
    %153 = vmatprep.subr.mxu0 0.0
    %154 = vmatpush1.xpose.msra.mxu0 0.0
    %155 = vmatprep.subr.mxu0 0.0
    %156 = vmatpush1.xpose.msra.mxu0 0.0
    %157 = vmatprep.subr.mxu0 0.0
    %158 = vmatpush1.xpose.msra.mxu0 0.0
    %159 = vmatprep.mubr.f32.mxu0 0.0
    %160 = vmatmul.mubr.f32.gmra.mrb[0].mxu0 %v63
    %v161 = vpop.f32.mrb[0].mxu0
    %v162 = vadd.f32 0.0, %v161
    %v163 = vpop.f32.mrb[0].mxu0
    %164 = vmatprep.mubr.f32.mxu0 0.0
    %165 = vmatmul.mubr.f32.gmra.mrb[0].mxu0 %v64
    %v166 = vpop.f32.mrb[0].mxu0
    %v167 = vadd.f32 0.0, %v166
    %v168 = vpop.f32.mrb[0].mxu0
    %169 = vmatprep.mubr.f32.mxu0 0.0
    %170 = vmatmul.mubr.f32.gmra.mrb[0].mxu0 %v65
    %v171 = vpop.f32.mrb[0].mxu0
    %v172 = vadd.f32 0.0, %v171
    %v173 = vpop.f32.mrb[0].mxu0
    %174 = vmatprep.mubr.f32.mxu0 0.0
    %175 = vmatmul.mubr.f32.gmra.mrb[0].mxu0 %v66
    %v176 = vpop.f32.mrb[0].mxu0
    %v177 = vadd.f32 0.0, %v176
    %v178 = vpop.f32.mrb[0].mxu0
    %179 = vmatprep.mubr.f32.mxu0 0.0
    %180 = vmatmul.mubr.f32.gmra.mrb[0].mxu0 %v67
    %v181 = vpop.f32.mrb[0].mxu0
    %v182 = vadd.f32 0.0, %v181
    %v183 = vpop.f32.mrb[0].mxu0
    %184 = vmatprep.mubr.f32.mxu0 0.0
    %185 = vmatmul.mubr.f32.gmra.mrb[0].mxu0 %v68
    %v186 = vpop.f32.mrb[0].mxu0
    %v187 = vadd.f32 0.0, %v186
    %v188 = vpop.f32.mrb[0].mxu0
    %189 = vmatprep.mubr.f32.mxu0 0.0
    %190 = vmatmul.mubr.f32.gmra.mrb[0].mxu0 %v69
    %v191 = vpop.f32.mrb[0].mxu0
    %v192 = vadd.f32 0.0, %v191
    %v193 = vpop.f32.mrb[0].mxu0
    %194 = vmatprep.mubr.f32.mxu0 0.0
    %195 = vmatmul.mubr.f32.gmra.mrb[0].mxu0 %v70
    %v196 = vpop.f32.mrb[0].mxu0
    %v197 = vadd.f32 0.0, %v196
    %v198 = vpop.f32.mrb[0].mxu0
    %199 = vmatprep.mubr.f32.mxu0 0.0
    %200 = vmatmul.mubr.f32.gmra.mrb[0].mxu0 %v71
    %v201 = vpop.f32.mrb[0].mxu0
    %v202 = vadd.f32 0.0, %v201
    %v203 = vpop.f32.mrb[0].mxu0
    %204 = vmatprep.mubr.f32.mxu0 0.0
    %205 = vmatmul.mubr.f32.gmra.mrb[0].mxu0 %v72
    %v206 = vpop.f32.mrb[0].mxu0
    %v207 = vadd.f32 0.0, %v206
    %v208 = vpop.f32.mrb[0].mxu0
    %209 = vmatprep.mubr.f32.mxu0 0.0
    %210 = vmatmul.mubr.f32.gmra.mrb[0].mxu0 %v73
    %v211 = vpop.f32.mrb[0].mxu0
    %v212 = vadd.f32 0.0, %v211
    %v213 = vpop.f32.mrb[0].mxu0
    %214 = vmatprep.mubr.f32.mxu0 0.0
    %215 = vmatmul.mubr.f32.gmra.mrb[0].mxu0 %v74
    %v216 = vpop.f32.mrb[0].mxu0
    %v217 = vadd.f32 0.0, %v216
    %v218 = vpop.f32.mrb[0].mxu0
    %219 = vmatprep.mubr.f32.mxu0 0.0
    %220 = vmatmul.mubr.f32.gmra.mrb[0].mxu0 %v75
    %v221 = vpop.f32.mrb[0].mxu0
    %v222 = vadd.f32 0.0, %v221
    %v223 = vpop.f32.mrb[0].mxu0
    %224 = vmatprep.mubr.f32.mxu0 0.0
    %225 = vmatmul.mubr.f32.gmra.mrb[0].mxu0 %v76
    %v226 = vpop.f32.mrb[0].mxu0
    %v227 = vadd.f32 0.0, %v226
    %v228 = vpop.f32.mrb[0].mxu0
    %229 = vmatprep.mubr.f32.mxu0 0.0
    %230 = vmatmul.mubr.f32.gmra.mrb[0].mxu0 %v77
    %v231 = vpop.f32.mrb[0].mxu0
    %v232 = vadd.f32 0.0, %v231
    %v233 = vpop.f32.mrb[0].mxu0
    %234 = vmatprep.mubr.f32.mxu0 0.0
    %235 = vmatmul.mubr.f32.gmra.mrb[0].mxu0 %v78
    %v236 = vpop.f32.mrb[0].mxu0
    %v237 = vadd.f32 0.0, %v236
    %v238 = vpop.f32.mrb[0].mxu0
    %239 = vdwg.mxu0
    %v240 = vld [vmem:[%s3] sm:$0x1]
    %v241 = vld [vmem:[%s3 + $0x1] sm:$0x1]
    %v242 = vadd.f32 %v162, %v167
    %v243 = vadd.f32 %v242, %v172
    %v244 = vadd.f32 %v243, %v177
    %v245 = vadd.f32 %v244, %v182
    %v246 = vadd.f32 %v245, %v187
    %v247 = vadd.f32 %v246, %v192
    %v248 = vadd.f32 %v247, %v197
    %v249 = vadd.f32 %v248, %v202
    %v250 = vadd.f32 %v249, %v207
    %v251 = vadd.f32 %v250, %v212
    %v252 = vadd.f32 %v251, %v217
    %v253 = vadd.f32 %v252, %v222
    %v254 = vadd.f32 %v253, %v227
    %v255 = vadd.f32 %v254, %v232
    %v256 = vadd.f32 %v255, %v237
    %v257 = vrot.slane %v256, 4
    %v258 = vadd.f32 %v256, %v257
    %v259 = vrot.slane %v258, 2
    %v260 = vadd.f32 %v258, %v259
    %v261 = vrot.slane %v260, 1
    %v262 = vadd.f32 %v260, %v261
    %v263 = vmul.f32 %v262, 0.0078125
    %v264 = vmul.f32 %v162, %v162
    %v265 = vmul.f32 %v167, %v167
    %v266 = vmul.f32 %v172, %v172
    %v267 = vmul.f32 %v177, %v177
    %v268 = vmul.f32 %v182, %v182
    %v269 = vmul.f32 %v187, %v187
    %v270 = vmul.f32 %v192, %v192
    %v271 = vmul.f32 %v197, %v197
    %v272 = vmul.f32 %v202, %v202
    %v273 = vmul.f32 %v207, %v207
    %v274 = vmul.f32 %v212, %v212
    %v275 = vmul.f32 %v217, %v217
    %v276 = vmul.f32 %v222, %v222
    %v277 = vmul.f32 %v227, %v227
    %v278 = vmul.f32 %v232, %v232
    %v279 = vmul.f32 %v237, %v237
    %v280 = vadd.f32 %v264, %v265
    %v281 = vadd.f32 %v280, %v266
    %v282 = vadd.f32 %v281, %v267
    %v283 = vadd.f32 %v282, %v268
    %v284 = vadd.f32 %v283, %v269
    %v285 = vadd.f32 %v284, %v270
    %v286 = vadd.f32 %v285, %v271
    %v287 = vadd.f32 %v286, %v272
    %v288 = vadd.f32 %v287, %v273
    %v289 = vadd.f32 %v288, %v274
    %v290 = vadd.f32 %v289, %v275
    %v291 = vadd.f32 %v290, %v276
    %v292 = vadd.f32 %v291, %v277
    %v293 = vadd.f32 %v292, %v278
    %v294 = vadd.f32 %v293, %v279
    %v295 = vrot.slane %v294, 4
    %v296 = vadd.f32 %v294, %v295
    %v297 = vrot.slane %v296, 2
    %v298 = vadd.f32 %v296, %v297
    %v299 = vrot.slane %v298, 1
    %v300 = vadd.f32 %v298, %v299
    %v301 = vmul.f32 %v300, 0.0078125
    %v302 = vmul.f32 %v263, %v263
    %v303 = vsub.f32 %v301, %v302
    %v304 = vmax.f32 %v303, 0.0
    %v305 = vadd.f32 %v304, 1e-05
    %v306 = vrsqrt.pop %v305
    %v307 = vmul.f32 %v240, %v306
    %v308 = vmul.f32 %v263, %v307
    %v309 = vsub.f32 %v241, %v308
    %v310 = vlaneseq
    %v311 = vshrl.u32 %v310, 7
    %v312 = vsub.s32 0, %v311
    %v313 = vrot.slane %v307, %v312
    %v314 = vmul.f32 %v162, %v313
    %v315 = vmul.f32 %v167, %v313
    %v316 = vmul.f32 %v172, %v313
    %v317 = vmul.f32 %v177, %v313
    %v318 = vmul.f32 %v182, %v313
    %v319 = vmul.f32 %v187, %v313
    %v320 = vmul.f32 %v192, %v313
    %v321 = vmul.f32 %v197, %v313
    %v322 = vmul.f32 %v202, %v313
    %v323 = vmul.f32 %v207, %v313
    %v324 = vmul.f32 %v212, %v313
    %v325 = vmul.f32 %v217, %v313
    %v326 = vmul.f32 %v222, %v313
    %v327 = vmul.f32 %v227, %v313
    %v328 = vmul.f32 %v232, %v313
    %v329 = vmul.f32 %v237, %v313
    %v330 = vlaneseq
    %v331 = vshrl.u32 %v330, 7
    %v332 = vsub.s32 0, %v331
    %v333 = vrot.slane %v309, %v332
    %v334 = vadd.f32 %v314, %v333
    %v335 = vadd.f32 %v315, %v333
    %v336 = vadd.f32 %v316, %v333
    %v337 = vadd.f32 %v317, %v333
    %v338 = vadd.f32 %v318, %v333
    %v339 = vadd.f32 %v319, %v333
    %v340 = vadd.f32 %v320, %v333
    %v341 = vadd.f32 %v321, %v333
    %v342 = vadd.f32 %v322, %v333
    %v343 = vadd.f32 %v323, %v333
    %v344 = vadd.f32 %v324, %v333
    %v345 = vadd.f32 %v325, %v333
    %v346 = vadd.f32 %v326, %v333
    %v347 = vadd.f32 %v327, %v333
    %v348 = vadd.f32 %v328, %v333
    %v349 = vadd.f32 %v329, %v333
    %v350 = vmax.f32 %v334, 0.0
    %v351 = vmax.f32 %v335, 0.0
    %v352 = vmax.f32 %v336, 0.0
    %v353 = vmax.f32 %v337, 0.0
    %v354 = vmax.f32 %v338, 0.0
    %v355 = vmax.f32 %v339, 0.0
    %v356 = vmax.f32 %v340, 0.0
    %v357 = vmax.f32 %v341, 0.0
    %v358 = vmax.f32 %v342, 0.0
    %v359 = vmax.f32 %v343, 0.0
    %v360 = vmax.f32 %v344, 0.0
    %v361 = vmax.f32 %v345, 0.0
    %v362 = vmax.f32 %v346, 0.0
    %v363 = vmax.f32 %v347, 0.0
    %v364 = vmax.f32 %v348, 0.0
    %v365 = vmax.f32 %v349, 0.0
    %366 = vst [vmem:[#allocation9] sm:$0xff] %v350
    %367 = vst [vmem:[#allocation9 + $0x8] sm:$0xff] %v351
    %368 = vst [vmem:[#allocation9 + $0x10] sm:$0xff] %v352
    %369 = vst [vmem:[#allocation9 + $0x18] sm:$0xff] %v353
    %370 = vst [vmem:[#allocation9 + $0x20] sm:$0xff] %v354
    %371 = vst [vmem:[#allocation9 + $0x28] sm:$0xff] %v355
    %372 = vst [vmem:[#allocation9 + $0x30] sm:$0xff] %v356
    %373 = vst [vmem:[#allocation9 + $0x38] sm:$0xff] %v357
    %374 = vst [vmem:[#allocation9 + $0x40] sm:$0xff] %v358
    %375 = vst [vmem:[#allocation9 + $0x48] sm:$0xff] %v359
    %376 = vst [vmem:[#allocation9 + $0x50] sm:$0xff] %v360
    %377 = vst [vmem:[#allocation9 + $0x58] sm:$0xff] %v361
    %378 = vst [vmem:[#allocation9 + $0x60] sm:$0xff] %v362
    %379 = vst [vmem:[#allocation9 + $0x68] sm:$0xff] %v363
    %380 = vst [vmem:[#allocation9 + $0x70] sm:$0xff] %v364
    %381 = vst [vmem:[#allocation9 + $0x78] sm:$0xff] %v365
    %v382 = vld [vmem:[#allocation7] sm:$0xff]
    %v383 = vld [vmem:[#allocation7 + $0x8] sm:$0xff]
    %v384 = vld [vmem:[#allocation7 + $0x10] sm:$0xff]
    %v385 = vld [vmem:[#allocation7 + $0x18] sm:$0xff]
    %v386 = vld [vmem:[#allocation7 + $0x20] sm:$0xff]
    %v387 = vld [vmem:[#allocation7 + $0x28] sm:$0xff]
    %v388 = vld [vmem:[#allocation7 + $0x30] sm:$0xff]
    %v389 = vld [vmem:[#allocation7 + $0x38] sm:$0xff]
    %v390 = vld [vmem:[#allocation7 + $0x40] sm:$0xff]
    %v391 = vld [vmem:[#allocation7 + $0x48] sm:$0xff]
    %v392 = vld [vmem:[#allocation7 + $0x50] sm:$0xff]
    %v393 = vld [vmem:[#allocation7 + $0x58] sm:$0xff]
    %v394 = vld [vmem:[#allocation7 + $0x60] sm:$0xff]
    %v395 = vld [vmem:[#allocation7 + $0x68] sm:$0xff]
    %v396 = vld [vmem:[#allocation7 + $0x70] sm:$0xff]
    %v397 = vld [vmem:[#allocation7 + $0x78] sm:$0xff]
    %398 = vmatprep.subr.mxu0 0.0
    %399 = vmatpush1.xpose.msra.mxu0 %v382
    %400 = vmatprep.subr.mxu0 0.0
    %401 = vmatpush1.xpose.msra.mxu0 %v383
    %402 = vmatprep.subr.mxu0 0.0
    %403 = vmatpush1.xpose.msra.mxu0 %v384
    %404 = vmatprep.subr.mxu0 0.0
    %405 = vmatpush1.xpose.msra.mxu0 %v385
    %406 = vmatprep.subr.mxu0 0.0
    %407 = vmatpush1.xpose.msra.mxu0 %v386
    %408 = vmatprep.subr.mxu0 0.0
    %409 = vmatpush1.xpose.msra.mxu0 %v387
    %410 = vmatprep.subr.mxu0 0.0
    %411 = vmatpush1.xpose.msra.mxu0 %v388
    %412 = vmatprep.subr.mxu0 0.0
    %413 = vmatpush1.xpose.msra.mxu0 %v389
    %414 = vmatprep.subr.mxu0 0.0
    %415 = vmatpush1.xpose.msra.mxu0 %v390
    %416 = vmatprep.subr.mxu0 0.0
    %417 = vmatpush1.xpose.msra.mxu0 %v391
    %418 = vmatprep.subr.mxu0 0.0
    %419 = vmatpush1.xpose.msra.mxu0 %v392
    %420 = vmatprep.subr.mxu0 0.0
    %421 = vmatpush1.xpose.msra.mxu0 %v393
    %422 = vmatprep.subr.mxu0 0.0
    %423 = vmatpush1.xpose.msra.mxu0 %v394
    %424 = vmatprep.subr.mxu0 0.0
    %425 = vmatpush1.xpose.msra.mxu0 %v395
    %426 = vmatprep.subr.mxu0 0.0
    %427 = vmatpush1.xpose.msra.mxu0 %v396
    %428 = vmatprep.subr.mxu0 0.0
    %429 = vmatpush1.xpose.msra.mxu0 %v397
    %430 = vmatprep.subr.mxu0 0.0
    %431 = vmatpush1.xpose.msra.mxu0 0.0
    %432 = vmatprep.subr.mxu0 0.0
    %433 = vmatpush1.xpose.msra.mxu0 0.0
    %434 = vmatprep.subr.mxu0 0.0
    %435 = vmatpush1.xpose.msra.mxu0 0.0
    %436 = vmatprep.subr.mxu0 0.0
    %437 = vmatpush1.xpose.msra.mxu0 0.0
    %438 = vmatprep.subr.mxu0 0.0
    %439 = vmatpush1.xpose.msra.mxu0 0.0
    %440 = vmatprep.subr.mxu0 0.0
    %441 = vmatpush1.xpose.msra.mxu0 0.0
    %442 = vmatprep.subr.mxu0 0.0
    %443 = vmatpush1.xpose.msra.mxu0 0.0
    %444 = vmatprep.subr.mxu0 0.0
    %445 = vmatpush1.xpose.msra.mxu0 0.0
    %446 = vmatprep.subr.mxu0 0.0
    %447 = vmatpush1.xpose.msra.mxu0 0.0
    %448 = vmatprep.subr.mxu0 0.0
    %449 = vmatpush1.xpose.msra.mxu0 0.0
    %450 = vmatprep.subr.mxu0 0.0
    %451 = vmatpush1.xpose.msra.mxu0 0.0
    %452 = vmatprep.subr.mxu0 0.0
    %453 = vmatpush1.xpose.msra.mxu0 0.0
    %454 = vmatprep.subr.mxu0 0.0
    %455 = vmatpush1.xpose.msra.mxu0 0.0
    %456 = vmatprep.subr.mxu0 0.0
    %457 = vmatpush1.xpose.msra.mxu0 0.0
    %458 = vmatprep.subr.mxu0 0.0
    %459 = vmatpush1.xpose.msra.mxu0 0.0
    %460 = vmatprep.subr.mxu0 0.0
    %461 = vmatpush1.xpose.msra.mxu0 0.0
    %462 = vmatprep.mubr.f32.mxu0 0.0
    %463 = vmatmul.mubr.f32.gmra.mrb[0].mxu0 %v350
    %v464 = vpop.f32.mrb[0].mxu0
    %v465 = vadd.f32 0.0, %v464
    %v466 = vpop.f32.mrb[0].mxu0
    %467 = vmatprep.mubr.f32.mxu0 0.0
    %468 = vmatmul.mubr.f32.gmra.mrb[0].mxu0 %v351
    %v469 = vpop.f32.mrb[0].mxu0
    %v470 = vadd.f32 0.0, %v469
    %v471 = vpop.f32.mrb[0].mxu0
    %472 = vmatprep.mubr.f32.mxu0 0.0
    %473 = vmatmul.mubr.f32.gmra.mrb[0].mxu0 %v352
    %v474 = vpop.f32.mrb[0].mxu0
    %v475 = vadd.f32 0.0, %v474
    %v476 = vpop.f32.mrb[0].mxu0
    %477 = vmatprep.mubr.f32.mxu0 0.0
    %478 = vmatmul.mubr.f32.gmra.mrb[0].mxu0 %v353
    %v479 = vpop.f32.mrb[0].mxu0
    %v480 = vadd.f32 0.0, %v479
    %v481 = vpop.f32.mrb[0].mxu0
    %482 = vmatprep.mubr.f32.mxu0 0.0
    %483 = vmatmul.mubr.f32.gmra.mrb[0].mxu0 %v354
    %v484 = vpop.f32.mrb[0].mxu0
    %v485 = vadd.f32 0.0, %v484
    %v486 = vpop.f32.mrb[0].mxu0
    %487 = vmatprep.mubr.f32.mxu0 0.0
    %488 = vmatmul.mubr.f32.gmra.mrb[0].mxu0 %v355
    %v489 = vpop.f32.mrb[0].mxu0
    %v490 = vadd.f32 0.0, %v489
    %v491 = vpop.f32.mrb[0].mxu0
    %492 = vmatprep.mubr.f32.mxu0 0.0
    %493 = vmatmul.mubr.f32.gmra.mrb[0].mxu0 %v356
    %v494 = vpop.f32.mrb[0].mxu0
    %v495 = vadd.f32 0.0, %v494
    %v496 = vpop.f32.mrb[0].mxu0
    %497 = vmatprep.mubr.f32.mxu0 0.0
    %498 = vmatmul.mubr.f32.gmra.mrb[0].mxu0 %v357
    %v499 = vpop.f32.mrb[0].mxu0
    %v500 = vadd.f32 0.0, %v499
    %v501 = vpop.f32.mrb[0].mxu0
    %502 = vmatprep.mubr.f32.mxu0 0.0
    %503 = vmatmul.mubr.f32.gmra.mrb[0].mxu0 %v358
    %v504 = vpop.f32.mrb[0].mxu0
    %v505 = vadd.f32 0.0, %v504
    %v506 = vpop.f32.mrb[0].mxu0
    %507 = vmatprep.mubr.f32.mxu0 0.0
    %508 = vmatmul.mubr.f32.gmra.mrb[0].mxu0 %v359
    %v509 = vpop.f32.mrb[0].mxu0
    %v510 = vadd.f32 0.0, %v509
    %v511 = vpop.f32.mrb[0].mxu0
    %512 = vmatprep.mubr.f32.mxu0 0.0
    %513 = vmatmul.mubr.f32.gmra.mrb[0].mxu0 %v360
    %v514 = vpop.f32.mrb[0].mxu0
    %v515 = vadd.f32 0.0, %v514
    %v516 = vpop.f32.mrb[0].mxu0
    %517 = vmatprep.mubr.f32.mxu0 0.0
    %518 = vmatmul.mubr.f32.gmra.mrb[0].mxu0 %v361
    %v519 = vpop.f32.mrb[0].mxu0
    %v520 = vadd.f32 0.0, %v519
    %v521 = vpop.f32.mrb[0].mxu0
    %522 = vmatprep.mubr.f32.mxu0 0.0
    %523 = vmatmul.mubr.f32.gmra.mrb[0].mxu0 %v362
    %v524 = vpop.f32.mrb[0].mxu0
    %v525 = vadd.f32 0.0, %v524
    %v526 = vpop.f32.mrb[0].mxu0
    %527 = vmatprep.mubr.f32.mxu0 0.0
    %528 = vmatmul.mubr.f32.gmra.mrb[0].mxu0 %v363
    %v529 = vpop.f32.mrb[0].mxu0
    %v530 = vadd.f32 0.0, %v529
    %v531 = vpop.f32.mrb[0].mxu0
    %532 = vmatprep.mubr.f32.mxu0 0.0
    %533 = vmatmul.mubr.f32.gmra.mrb[0].mxu0 %v364
    %v534 = vpop.f32.mrb[0].mxu0
    %v535 = vadd.f32 0.0, %v534
    %v536 = vpop.f32.mrb[0].mxu0
    %537 = vmatprep.mubr.f32.mxu0 0.0
    %538 = vmatmul.mubr.f32.gmra.mrb[0].mxu0 %v365
    %v539 = vpop.f32.mrb[0].mxu0
    %v540 = vadd.f32 0.0, %v539
    %v541 = vpop.f32.mrb[0].mxu0
    %542 = vdwg.mxu0
    %v543 = vld [vmem:[%s3 + $0x2] sm:$0x1]
    %v544 = vld [vmem:[%s3 + $0x3] sm:$0x1]
    %v545 = vadd.f32 %v465, %v470
    %v546 = vadd.f32 %v545, %v475
    %v547 = vadd.f32 %v546, %v480
    %v548 = vadd.f32 %v547, %v485
    %v549 = vadd.f32 %v548, %v490
    %v550 = vadd.f32 %v549, %v495
    %v551 = vadd.f32 %v550, %v500
    %v552 = vadd.f32 %v551, %v505
    %v553 = vadd.f32 %v552, %v510
    %v554 = vadd.f32 %v553, %v515
    %v555 = vadd.f32 %v554, %v520
    %v556 = vadd.f32 %v555, %v525
    %v557 = vadd.f32 %v556, %v530
    %v558 = vadd.f32 %v557, %v535
    %v559 = vadd.f32 %v558, %v540
    %v560 = vrot.slane %v559, 4
    %v561 = vadd.f32 %v559, %v560
    %v562 = vrot.slane %v561, 2
    %v563 = vadd.f32 %v561, %v562
    %v564 = vrot.slane %v563, 1
    %v565 = vadd.f32 %v563, %v564
    %v566 = vmul.f32 %v565, 0.0078125
    %v567 = vmul.f32 %v465, %v465
    %v568 = vmul.f32 %v470, %v470
    %v569 = vmul.f32 %v475, %v475
    %v570 = vmul.f32 %v480, %v480
    %v571 = vmul.f32 %v485, %v485
    %v572 = vmul.f32 %v490, %v490
    %v573 = vmul.f32 %v495, %v495
    %v574 = vmul.f32 %v500, %v500
    %v575 = vmul.f32 %v505, %v505
    %v576 = vmul.f32 %v510, %v510
    %v577 = vmul.f32 %v515, %v515
    %v578 = vmul.f32 %v520, %v520
    %v579 = vmul.f32 %v525, %v525
    %v580 = vmul.f32 %v530, %v530
    %v581 = vmul.f32 %v535, %v535
    %v582 = vmul.f32 %v540, %v540
    %v583 = vadd.f32 %v567, %v568
    %v584 = vadd.f32 %v583, %v569
    %v585 = vadd.f32 %v584, %v570
    %v586 = vadd.f32 %v585, %v571
    %v587 = vadd.f32 %v586, %v572
    %v588 = vadd.f32 %v587, %v573
    %v589 = vadd.f32 %v588, %v574
    %v590 = vadd.f32 %v589, %v575
    %v591 = vadd.f32 %v590, %v576
    %v592 = vadd.f32 %v591, %v577
    %v593 = vadd.f32 %v592, %v578
    %v594 = vadd.f32 %v593, %v579
    %v595 = vadd.f32 %v594, %v580
    %v596 = vadd.f32 %v595, %v581
    %v597 = vadd.f32 %v596, %v582
    %v598 = vrot.slane %v597, 4
    %v599 = vadd.f32 %v597, %v598
    %v600 = vrot.slane %v599, 2
    %v601 = vadd.f32 %v599, %v600
    %v602 = vrot.slane %v601, 1
    %v603 = vadd.f32 %v601, %v602
    %v604 = vmul.f32 %v603, 0.0078125
    %v605 = vmul.f32 %v566, %v566
    %v606 = vsub.f32 %v604, %v605
    %v607 = vmax.f32 %v606, 0.0
    %v608 = vadd.f32 %v607, 1e-05
    %v609 = vrsqrt.pop %v608
    %v610 = vmul.f32 %v543, %v609
    %v611 = vmul.f32 %v566, %v610
    %v612 = vsub.f32 %v544, %v611
    %v613 = vlaneseq
    %v614 = vshrl.u32 %v613, 7
    %v615 = vsub.s32 0, %v614
    %v616 = vrot.slane %v610, %v615
    %v617 = vmul.f32 %v465, %v616
    %v618 = vmul.f32 %v470, %v616
    %v619 = vmul.f32 %v475, %v616
    %v620 = vmul.f32 %v480, %v616
    %v621 = vmul.f32 %v485, %v616
    %v622 = vmul.f32 %v490, %v616
    %v623 = vmul.f32 %v495, %v616
    %v624 = vmul.f32 %v500, %v616
    %v625 = vmul.f32 %v505, %v616
    %v626 = vmul.f32 %v510, %v616
    %v627 = vmul.f32 %v515, %v616
    %v628 = vmul.f32 %v520, %v616
    %v629 = vmul.f32 %v525, %v616
    %v630 = vmul.f32 %v530, %v616
    %v631 = vmul.f32 %v535, %v616
    %v632 = vmul.f32 %v540, %v616
    %v633 = vlaneseq
    %v634 = vshrl.u32 %v633, 7
    %v635 = vsub.s32 0, %v634
    %v636 = vrot.slane %v612, %v635
    %v637 = vadd.f32 %v617, %v636
    %v638 = vadd.f32 %v618, %v636
    %v639 = vadd.f32 %v619, %v636
    %v640 = vadd.f32 %v620, %v636
    %v641 = vadd.f32 %v621, %v636
    %v642 = vadd.f32 %v622, %v636
    %v643 = vadd.f32 %v623, %v636
    %v644 = vadd.f32 %v624, %v636
    %v645 = vadd.f32 %v625, %v636
    %v646 = vadd.f32 %v626, %v636
    %v647 = vadd.f32 %v627, %v636
    %v648 = vadd.f32 %v628, %v636
    %v649 = vadd.f32 %v629, %v636
    %v650 = vadd.f32 %v630, %v636
    %v651 = vadd.f32 %v631, %v636
    %v652 = vadd.f32 %v632, %v636
    %v653 = vmax.f32 %v637, 0.0
    %v654 = vmax.f32 %v638, 0.0
    %v655 = vmax.f32 %v639, 0.0
    %v656 = vmax.f32 %v640, 0.0
    %v657 = vmax.f32 %v641, 0.0
    %v658 = vmax.f32 %v642, 0.0
    %v659 = vmax.f32 %v643, 0.0
    %v660 = vmax.f32 %v644, 0.0
    %v661 = vmax.f32 %v645, 0.0
    %v662 = vmax.f32 %v646, 0.0
    %v663 = vmax.f32 %v647, 0.0
    %v664 = vmax.f32 %v648, 0.0
    %v665 = vmax.f32 %v649, 0.0
    %v666 = vmax.f32 %v650, 0.0
    %v667 = vmax.f32 %v651, 0.0
    %v668 = vmax.f32 %v652, 0.0
    %669 = vst [vmem:[#allocation11] sm:$0xff] %v653
    %670 = vst [vmem:[#allocation11 + $0x8] sm:$0xff] %v654
    %671 = vst [vmem:[#allocation11 + $0x10] sm:$0xff] %v655
    %672 = vst [vmem:[#allocation11 + $0x18] sm:$0xff] %v656
    %673 = vst [vmem:[#allocation11 + $0x20] sm:$0xff] %v657
    %674 = vst [vmem:[#allocation11 + $0x28] sm:$0xff] %v658
    %675 = vst [vmem:[#allocation11 + $0x30] sm:$0xff] %v659
    %676 = vst [vmem:[#allocation11 + $0x38] sm:$0xff] %v660
    %677 = vst [vmem:[#allocation11 + $0x40] sm:$0xff] %v661
    %678 = vst [vmem:[#allocation11 + $0x48] sm:$0xff] %v662
    %679 = vst [vmem:[#allocation11 + $0x50] sm:$0xff] %v663
    %680 = vst [vmem:[#allocation11 + $0x58] sm:$0xff] %v664
    %681 = vst [vmem:[#allocation11 + $0x60] sm:$0xff] %v665
    %682 = vst [vmem:[#allocation11 + $0x68] sm:$0xff] %v666
    %683 = vst [vmem:[#allocation11 + $0x70] sm:$0xff] %v667
    %684 = vst [vmem:[#allocation11 + $0x78] sm:$0xff] %v668
    %v685 = vld [vmem:[#allocation2] sm:$0xff]
    %v686 = vld [vmem:[#allocation2 + $0x8] sm:$0xff]
    %v687 = vld [vmem:[#allocation2 + $0x10] sm:$0xff]
    %v688 = vld [vmem:[#allocation2 + $0x18] sm:$0xff]
    %v689 = vld [vmem:[#allocation2 + $0x20] sm:$0xff]
    %v690 = vld [vmem:[#allocation2 + $0x28] sm:$0xff]
    %v691 = vld [vmem:[#allocation2 + $0x30] sm:$0xff]
    %v692 = vld [vmem:[#allocation2 + $0x38] sm:$0xff]
    %v693 = vld [vmem:[#allocation2 + $0x40] sm:$0xff]
    %v694 = vld [vmem:[#allocation2 + $0x48] sm:$0xff]
    %v695 = vld [vmem:[#allocation2 + $0x50] sm:$0xff]
    %v696 = vld [vmem:[#allocation2 + $0x58] sm:$0xff]
    %v697 = vld [vmem:[#allocation2 + $0x60] sm:$0xff]
    %v698 = vld [vmem:[#allocation2 + $0x68] sm:$0xff]
    %v699 = vld [vmem:[#allocation2 + $0x70] sm:$0xff]
    %v700 = vld [vmem:[#allocation2 + $0x78] sm:$0xff]
    %v701 = vadd.f32 %v685, %v653
    %v702 = vadd.f32 %v686, %v654
    %v703 = vadd.f32 %v687, %v655
    %v704 = vadd.f32 %v688, %v656
    %v705 = vadd.f32 %v689, %v657
    %v706 = vadd.f32 %v690, %v658
    %v707 = vadd.f32 %v691, %v659
    %v708 = vadd.f32 %v692, %v660
    %v709 = vadd.f32 %v693, %v661
    %v710 = vadd.f32 %v694, %v662
    %v711 = vadd.f32 %v695, %v663
    %v712 = vadd.f32 %v696, %v664
    %v713 = vadd.f32 %v697, %v665
    %v714 = vadd.f32 %v698, %v666
    %v715 = vadd.f32 %v699, %v667
    %v716 = vadd.f32 %v700, %v668
    %717 = vst [vmem:[#allocation8] sm:$0xff] %v701
    %718 = vst [vmem:[#allocation8 + $0x8] sm:$0xff] %v702
    %719 = vst [vmem:[#allocation8 + $0x10] sm:$0xff] %v703
    %720 = vst [vmem:[#allocation8 + $0x18] sm:$0xff] %v704
    %721 = vst [vmem:[#allocation8 + $0x20] sm:$0xff] %v705
    %722 = vst [vmem:[#allocation8 + $0x28] sm:$0xff] %v706
    %723 = vst [vmem:[#allocation8 + $0x30] sm:$0xff] %v707
    %724 = vst [vmem:[#allocation8 + $0x38] sm:$0xff] %v708
    %725 = vst [vmem:[#allocation8 + $0x40] sm:$0xff] %v709
    %726 = vst [vmem:[#allocation8 + $0x48] sm:$0xff] %v710
    %727 = vst [vmem:[#allocation8 + $0x50] sm:$0xff] %v711
    %728 = vst [vmem:[#allocation8 + $0x58] sm:$0xff] %v712
    %729 = vst [vmem:[#allocation8 + $0x60] sm:$0xff] %v713
    %730 = vst [vmem:[#allocation8 + $0x68] sm:$0xff] %v714
    %731 = vst [vmem:[#allocation8 + $0x70] sm:$0xff] %v715
    %732 = vst [vmem:[#allocation8 + $0x78] sm:$0xff] %v716
    // Predicated region
    $region30: #{tpu_custom_call.1} parent=1 // pred_check
      _
    $region31: #{tpu_custom_call.1} parent=1 // pred_check_branch
      %734 = sbr.rel (0) target = $region33
    $region32: #{tpu_custom_call.1} parent=1 // pred_region
      %s736 = ssub.s32 2048, 2048
      %737 = vsyncadd [#allocation4], %s736
      %s738 = sshll.u32 [#allocation8], 4
      %s739 = int_to_ptr.vmem [resolvable:$true] %s738
      %744 = dma.vmem_to_hbm [thread:$0]  %s739, 2048, %s4, [#allocation4], 128, 128, 8
    $region33: #{tpu_custom_call.1} parent=1 // pred_fallthru
      _
    // Predicated region
    $region34: #{tpu_custom_call.1} parent=1 // pred_check
      _
    $region35: #{tpu_custom_call.1} parent=1 // pred_check_branch
      %746 = sbr.rel (0) target = $region37
    $region36: #{tpu_custom_call.1} parent=1 // pred_region
      %s748 = ssub.s32 2048, 2048
      %749 = vsyncadd [#allocation10], %s748
      %s750 = sshll.u32 [#allocation9], 4
      %s751 = int_to_ptr.vmem [resolvable:$true] %s750
      %756 = dma.vmem_to_hbm [thread:$0]  %s751, 2048, %s5, [#allocation10], 128, 128, 8
    $region37: #{tpu_custom_call.1} parent=1 // pred_fallthru
      _
    // Predicated region
    $region38: #{tpu_custom_call.1} parent=1 // pred_check
      _
    $region39: #{tpu_custom_call.1} parent=1 // pred_check_branch
      %758 = sbr.rel (0) target = $region41
    $region40: #{tpu_custom_call.1} parent=1 // pred_region
      %s760 = ssub.s32 2048, 2048
      %761 = vsyncadd [#allocation10], %s760
      %s762 = sshll.u32 [#allocation11], 4
      %s763 = int_to_ptr.vmem [resolvable:$true] %s762
      %768 = dma.vmem_to_hbm [thread:$0]  %s763, 2048, %s6, [#allocation10], 128, 128, 8
    $region41: #{tpu_custom_call.1} parent=1 // pred_fallthru
      _
    // Predicated region
    $region42: #{tpu_custom_call.1} parent=1 // pred_check
      _
    $region43: #{tpu_custom_call.1} parent=1 // pred_check_branch
      %770 = sbr.rel (0) target = $region45
    $region44: #{tpu_custom_call.1} parent=1 // pred_region
      %771 = dma.done [#allocation4], 2048
    $region45: #{tpu_custom_call.1} parent=1 // pred_fallthru
      _
    // Predicated region
    $region46: #{tpu_custom_call.1} parent=1 // pred_check
      _
    $region47: #{tpu_custom_call.1} parent=1 // pred_check_branch
      %773 = sbr.rel (0) target = $region49
    $region48: #{tpu_custom_call.1} parent=1 // pred_region
      %774 = dma.done [#allocation10], 2048
    $region49: #{tpu_custom_call.1} parent=1 // pred_fallthru
      _
    // Predicated region
    $region50: #{tpu_custom_call.1} parent=1 // pred_check
      _
    $region51: #{tpu_custom_call.1} parent=1 // pred_check_branch
      %776 = sbr.rel (0) target = $region53
    $region52: #{tpu_custom_call.1} parent=1 // pred_region
      %777 = dma.done [#allocation10], 2048
    $region53: #{tpu_custom_call.1} parent=1 // pred_fallthru
      _
    %778 = vsyncpa [#allocation3], 1
    %779 = vsyncpa [#allocation6], 1
    %780 = vsyncpa [#allocation4], 1
    %781 = vsyncpa [#allocation10], 1

</llo_original>
